<compile_context>
chip_gen: v7x
topology: tpu7x:2x2x1
jax: 0.10.0
libtpu: 0.0.40
codegen_flags: <defaults>
</compile_context>

<pallas_src>
import math
import functools

import jax
import jax.numpy as jnp
from jax.experimental import pallas as pl
from jax.experimental.pallas import tpu as pltpu


def _layer_norm_f32(v, w, b, eps=1e-5):
    # v: (L, D) fp32 ; w, b: (D,) fp32
    mu = jnp.mean(v, axis=-1, keepdims=True)
    var = jnp.mean((v - mu) ** 2, axis=-1, keepdims=True)
    return (v - mu) * jax.lax.rsqrt(var + eps) * w + b


def residual_attn_block_kernel(
    x_ref,                               # (1, L, D)   fp32
    wq_ref, wk_ref, wv_ref,              # (D, D)      bf16, pre-transposed; wq pre-scaled
    bq_ref, bk_ref, bv_ref,              # (1, D)      fp32; bq pre-scaled
    wo_ref, bo_ref,                      # (D, D) bf16 pre-transposed, (1, D) fp32
    ln1w_ref, ln1b_ref,                  # (1, D)      fp32
    ln2w_ref, ln2b_ref,                  # (1, D)      fp32
    wfc_ref, bfc_ref,                    # (D, 4D) bf16 pre-transposed, (1, 4D) fp32
    wpj_ref, bpj_ref,                    # (4D, D) bf16 pre-transposed, (1, D) fp32
    o_ref,                               # (1, L, D)   fp32
    *, n_head: int,
):
    x = x_ref[0]                                          # (L, D) fp32
    L, D = x.shape
    Dh = D // n_head

    # ---- ln_1 (fp32 elementwise) ----
    y = _layer_norm_f32(x, ln1w_ref[0], ln1b_ref[0])
    y16 = y.astype(jnp.bfloat16)

    # ---- q / k / v projections: bf16 MXU inputs, fp32 accumulate ----
    q = jnp.dot(y16, wq_ref[...], preferred_element_type=jnp.float32) + bq_ref[0]
    k = jnp.dot(y16, wk_ref[...], preferred_element_type=jnp.float32) + bk_ref[0]
    v = jnp.dot(y16, wv_ref[...], preferred_element_type=jnp.float32) + bv_ref[0]
    q16 = q.astype(jnp.bfloat16)
    k16 = k.astype(jnp.bfloat16)
    v16 = v.astype(jnp.bfloat16)

    # ---- per-head attention, output projection accumulated per head ----
    attn = jnp.zeros((L, D), jnp.float32)
    for h in range(n_head):
        lo, hi = h * Dh, (h + 1) * Dh
        qh = q16[:, lo:hi]                                # (L, Dh) (scale folded into wq/bq)
        kh = k16[:, lo:hi]
        vh = v16[:, lo:hi]
        # scores: contract over Dh (no explicit k transpose materialized)
        s = jax.lax.dot_general(qh, kh, (((1,), (1,)), ((), ())),
                                preferred_element_type=jnp.float32)   # (L, L) fp32
        s = s - jnp.max(s, axis=-1, keepdims=True)
        p = jnp.exp(s)
        p = p * pl.reciprocal(jnp.sum(p, axis=-1, keepdims=True), approx=True)
        ho = jnp.dot(p.astype(jnp.bfloat16), vh,
                     preferred_element_type=jnp.float32)              # (L, Dh)
        # fold this head straight into the output projection (no concat)
        attn = attn + jnp.dot(ho.astype(jnp.bfloat16), wo_ref[lo:hi, :],
                              preferred_element_type=jnp.float32)
    x1 = x + attn + bo_ref[0]

    # ---- ln_2 + MLP (c_fc -> QuickGELU -> c_proj) + residual ----
    y2 = _layer_norm_f32(x1, ln2w_ref[0], ln2b_ref[0])
    hmid = jnp.dot(y2.astype(jnp.bfloat16), wfc_ref[...],
                   preferred_element_type=jnp.float32) + bfc_ref[0]
    hmid = hmid * jax.nn.sigmoid(1.702 * hmid)            # QuickGELU (fp32)
    out = x1 + jnp.dot(hmid.astype(jnp.bfloat16), wpj_ref[...],
                       preferred_element_type=jnp.float32) + bpj_ref[0]

    o_ref[0] = out


def prepare_params(params, n_head):
    """One-time host-side prep: transpose weights to [in, out], cast to bf16,
    fold the 1/sqrt(Dh) attention scale into w_q / b_q (biases stay fp32)."""
    D = params["w_q"].shape[0]
    scale = 1.0 / math.sqrt(D // n_head)
    bf16 = jnp.bfloat16
    f32 = jnp.float32
    return {
        "wq_t": (params["w_q"] * scale).T.astype(bf16),
        "wk_t": params["w_k"].T.astype(bf16),
        "wv_t": params["w_v"].T.astype(bf16),
        "bq": (params["b_q"] * scale).astype(f32),
        "bk": params["b_k"].astype(f32),
        "bv": params["b_v"].astype(f32),
        "wo_t": params["w_o"].T.astype(bf16),
        "bo": params["b_o"].astype(f32),
        "ln1_w": params["ln1_w"].astype(f32),
        "ln1_b": params["ln1_b"].astype(f32),
        "ln2_w": params["ln2_w"].astype(f32),
        "ln2_b": params["ln2_b"].astype(f32),
        "wfc_t": params["w_fc"].T.astype(bf16),     # (D, 4D)
        "bfc": params["b_fc"].astype(f32),
        "wpj_t": params["w_proj"].T.astype(bf16),   # (4D, D)
        "bpj": params["b_proj"].astype(f32),
    }


def _vmem_limit_bytes(L, D, Dff):
    # bf16 weights (x2 default buffering) + fp32 x/out blocks (x2) + fp32 temporaries,
    # with 1.5x headroom; floored at 16 MiB (safe on every chip), capped at 64 MiB.
    wbytes = 2 * 2 * (4 * D * D + 2 * D * Dff)
    iobytes = 2 * 2 * (L * D) * 4
    actbytes = 4 * (10 * L * D + 3 * L * Dff + 4 * L * L)
    est = int(1.5 * (wbytes + iobytes + actbytes))
    return min(64 * 1024 * 1024, max(16 * 1024 * 1024, est))


def residual_attention_block(x, kparams, n_head):
    """x: (L, N, D) fp32, seq-first like PyTorch MultiheadAttention."""
    L, N, D = x.shape
    Dff = kparams["wfc_t"].shape[1]
    # TODO(synk): accept batch-first input at the API boundary to drop this
    #             HBM round-trip (transpose in/out of the kernel layout).
    xb = jnp.transpose(x, (1, 0, 2))                      # (N, L, D)

    resident = lambda shape: pl.BlockSpec(shape, lambda n: (0, 0))  # constant index -> no re-DMA

    kernel = functools.partial(residual_attn_block_kernel, n_head=n_head)
    out = pl.pallas_call(
        kernel,
        out_shape=jax.ShapeDtypeStruct((N, L, D), jnp.float32),
        grid_spec=pltpu.PrefetchScalarGridSpec(
            num_scalar_prefetch=0,
            grid=(N,),
            in_specs=[
                pl.BlockSpec((1, L, D), lambda n: (n, 0, 0)),        # x
                resident((D, D)), resident((D, D)), resident((D, D)),  # wq_t, wk_t, wv_t
                resident((1, D)), resident((1, D)), resident((1, D)),  # bq, bk, bv
                resident((D, D)), resident((1, D)),                    # wo_t, bo
                resident((1, D)), resident((1, D)),                    # ln1 w, b
                resident((1, D)), resident((1, D)),                    # ln2 w, b
                resident((D, Dff)), resident((1, Dff)),                # wfc_t, bfc
                resident((Dff, D)), resident((1, D)),                  # wpj_t, bpj
            ],
            out_specs=pl.BlockSpec((1, L, D), lambda n: (n, 0, 0)),
        ),
        compiler_params=pltpu.CompilerParams(
            dimension_semantics=("parallel",),
            vmem_limit_bytes=_vmem_limit_bytes(L, D, Dff),
        ),
    )(
        xb,
        kparams["wq_t"], kparams["wk_t"], kparams["wv_t"],
        kparams["bq"], kparams["bk"], kparams["bv"],
        kparams["wo_t"], kparams["bo"],
        kparams["ln1_w"], kparams["ln1_b"],
        kparams["ln2_w"], kparams["ln2_b"],
        kparams["wfc_t"], kparams["bfc"],
        kparams["wpj_t"], kparams["bpj"],
    )
    return jnp.transpose(out, (1, 0, 2))                  # back to (L, N, D)


def reference_block(x, params, n_head):
    """Pure-JAX fp32 reference matching PyTorch semantics (attn_mask=None)."""
    L, N, D = x.shape
    Dh = D // n_head

    def ln(v, w, b, eps=1e-5):
        mu = jnp.mean(v, axis=-1, keepdims=True)
        var = jnp.mean((v - mu) ** 2, axis=-1, keepdims=True)
        return (v - mu) / jnp.sqrt(var + eps) * w[0] + b[0]

    y = ln(x, params["ln1_w"], params["ln1_b"])
    q = y @ params["w_q"].T + params["b_q"][0]
    k = y @ params["w_k"].T + params["b_k"][0]
    v = y @ params["w_v"].T + params["b_v"][0]
    rsh = lambda t: jnp.transpose(t.reshape(L, N, n_head, Dh), (1, 2, 0, 3))
    qh, kh, vh = rsh(q), rsh(k), rsh(v)
    s = jnp.einsum("nhld,nhmd->nhlm", qh / math.sqrt(Dh), kh)
    p = jax.nn.softmax(s, axis=-1)
    a = jnp.einsum("nhlm,nhmd->nhld", p, vh)
    a = jnp.transpose(a, (2, 0, 1, 3)).reshape(L, N, D)
    a = a @ params["w_o"].T + params["b_o"][0]
    x1 = x + a
    y2 = ln(x1, params["ln2_w"], params["ln2_b"])
    h = y2 @ params["w_fc"].T + params["b_fc"][0]
    h = h * jax.nn.sigmoid(1.702 * h)
    return x1 + h @ params["w_proj"].T + params["b_proj"][0]


def init_params(key, d_model, n_head):
    ks = jax.random.split(key, 8)
    s = 0.05
    D, Dff = d_model, 4 * d_model
    return {
        "w_q": s * jax.random.normal(ks[0], (D, D), jnp.float32),
        "w_k": s * jax.random.normal(ks[1], (D, D), jnp.float32),
        "w_v": s * jax.random.normal(ks[2], (D, D), jnp.float32),
        "b_q": s * jax.random.normal(ks[3], (1, D), jnp.float32),
        "b_k": jnp.zeros((1, D), jnp.float32),
        "b_v": jnp.zeros((1, D), jnp.float32),
        "w_o": s * jax.random.normal(ks[4], (D, D), jnp.float32),
        "b_o": jnp.zeros((1, D), jnp.float32),
        "ln1_w": jnp.ones((1, D), jnp.float32),
        "ln1_b": jnp.zeros((1, D), jnp.float32),
        "ln2_w": jnp.ones((1, D), jnp.float32),
        "ln2_b": jnp.zeros((1, D), jnp.float32),
        "w_fc": s * jax.random.normal(ks[5], (Dff, D), jnp.float32),
        "b_fc": s * jax.random.normal(ks[6], (1, Dff), jnp.float32),
        "w_proj": s * jax.random.normal(ks[7], (D, Dff), jnp.float32),
        "b_proj": jnp.zeros((1, D), jnp.float32),
    }


if __name__ == "__main__":
    L, N, D, H = 8, 2, 32, 4     # seq, batch, d_model, n_head
    key = jax.random.PRNGKey(0)
    kx, kp = jax.random.split(key)
    x = jax.random.normal(kx, (L, N, D), jnp.float32)
    params = init_params(kp, D, H)
    kparams = prepare_params(params, H)          # one-time host-side prep

    out = residual_attention_block(x, kparams, H)
    out = jax.block_until_ready(out)

    ref = reference_block(x, params, H)
    assert out.shape == (L, N, D)
    # bf16 MXU inputs + approx reciprocal => looser tolerance vs fp32 reference.
    assert jnp.allclose(out, ref, atol=2e-2, rtol=2e-2), "mismatch vs reference"
    print("KERNEL_OK")
</pallas_src>

<mosaic_0001>
module attributes {stable_mosaic.version = 11 : i64} {
  func.func @residual_attn_block_kernel(%arg0: i32, %arg1: memref<1x8x32xf32, #tpu.memory_space<vmem>>, %arg2: memref<32x32xbf16, #tpu.memory_space<vmem>>, %arg3: memref<32x32xbf16, #tpu.memory_space<vmem>>, %arg4: memref<32x32xbf16, #tpu.memory_space<vmem>>, %arg5: memref<1x32xf32, #tpu.memory_space<vmem>>, %arg6: memref<1x32xf32, #tpu.memory_space<vmem>>, %arg7: memref<1x32xf32, #tpu.memory_space<vmem>>, %arg8: memref<32x32xbf16, #tpu.memory_space<vmem>>, %arg9: memref<1x32xf32, #tpu.memory_space<vmem>>, %arg10: memref<1x32xf32, #tpu.memory_space<vmem>>, %arg11: memref<1x32xf32, #tpu.memory_space<vmem>>, %arg12: memref<1x32xf32, #tpu.memory_space<vmem>>, %arg13: memref<1x32xf32, #tpu.memory_space<vmem>>, %arg14: memref<32x128xbf16, #tpu.memory_space<vmem>>, %arg15: memref<1x128xf32, #tpu.memory_space<vmem>>, %arg16: memref<128x32xbf16, #tpu.memory_space<vmem>>, %arg17: memref<1x32xf32, #tpu.memory_space<vmem>>, %arg18: memref<1x8x32xf32, #tpu.memory_space<vmem>>) attributes {dimension_semantics = [#tpu.dimension_semantics<parallel>], iteration_bounds = array<i64: 2>, scalar_prefetch = 0 : i64, scratch_operands = 0 : i64, tpu.core_type = #tpu.core_type<tc>, window_params = [{transform_indices = @transform_0, window_bounds = array<i64: 1, 8, 32>}, {pipeline_mode = #tpu.pipeline_mode<synchronous>, transform_indices = @transform_1, window_bounds = array<i64: 32, 32>}, {pipeline_mode = #tpu.pipeline_mode<synchronous>, transform_indices = @transform_2, window_bounds = array<i64: 32, 32>}, {pipeline_mode = #tpu.pipeline_mode<synchronous>, transform_indices = @transform_3, window_bounds = array<i64: 32, 32>}, {pipeline_mode = #tpu.pipeline_mode<synchronous>, transform_indices = @transform_4, window_bounds = array<i64: 1, 32>}, {pipeline_mode = #tpu.pipeline_mode<synchronous>, transform_indices = @transform_5, window_bounds = array<i64: 1, 32>}, {pipeline_mode = #tpu.pipeline_mode<synchronous>, transform_indices = @transform_6, window_bounds = array<i64: 1, 32>}, {pipeline_mode = #tpu.pipeline_mode<synchronous>, transform_indices = @transform_7, window_bounds = array<i64: 32, 32>}, {pipeline_mode = #tpu.pipeline_mode<synchronous>, transform_indices = @transform_8, window_bounds = array<i64: 1, 32>}, {pipeline_mode = #tpu.pipeline_mode<synchronous>, transform_indices = @transform_9, window_bounds = array<i64: 1, 32>}, {pipeline_mode = #tpu.pipeline_mode<synchronous>, transform_indices = @transform_10, window_bounds = array<i64: 1, 32>}, {pipeline_mode = #tpu.pipeline_mode<synchronous>, transform_indices = @transform_11, window_bounds = array<i64: 1, 32>}, {pipeline_mode = #tpu.pipeline_mode<synchronous>, transform_indices = @transform_12, window_bounds = array<i64: 1, 32>}, {pipeline_mode = #tpu.pipeline_mode<synchronous>, transform_indices = @transform_13, window_bounds = array<i64: 32, 128>}, {pipeline_mode = #tpu.pipeline_mode<synchronous>, transform_indices = @transform_14, window_bounds = array<i64: 1, 128>}, {pipeline_mode = #tpu.pipeline_mode<synchronous>, transform_indices = @transform_15, window_bounds = array<i64: 128, 32>}, {pipeline_mode = #tpu.pipeline_mode<synchronous>, transform_indices = @transform_16, window_bounds = array<i64: 1, 32>}, {transform_indices = @transform_17, window_bounds = array<i64: 1, 8, 32>}]} {
    %c0 = arith.constant 0 : index
    %c0_0 = arith.constant 0 : index
    %c0_1 = arith.constant 0 : index
    %0 = vector.load %arg1[%c0, %c0_0, %c0_1] : memref<1x8x32xf32, #tpu.memory_space<vmem>>, vector<1x8x32xf32>
    %1 = vector.shape_cast %0 : vector<1x8x32xf32> to vector<8x32xf32>
    %c0_2 = arith.constant 0 : index
    %c0_3 = arith.constant 0 : index
    %2 = vector.load %arg10[%c0_2, %c0_3] : memref<1x32xf32, #tpu.memory_space<vmem>>, vector<1x32xf32>
    %3 = vector.shape_cast %2 : vector<1x32xf32> to vector<32xf32>
    %c0_4 = arith.constant 0 : index
    %c0_5 = arith.constant 0 : index
    %4 = vector.load %arg11[%c0_4, %c0_5] : memref<1x32xf32, #tpu.memory_space<vmem>>, vector<1x32xf32>
    %5 = vector.shape_cast %4 : vector<1x32xf32> to vector<32xf32>
    %cst = arith.constant dense<0.000000e+00> : vector<8xf32>
    %6 = vector.multi_reduction <add>, %1, %cst [1] : vector<8x32xf32> to vector<8xf32>
    %7 = vector.shape_cast %6 : vector<8xf32> to vector<8x1xf32>
    %cst_6 = arith.constant 3.200000e+01 : f32
    %8 = vector.broadcast %cst_6 : f32 to vector<8x1xf32>
    %9 = arith.divf %7, %8 : vector<8x1xf32>
    %10 = vector.broadcast %9 : vector<8x1xf32> to vector<8x32xf32>
    %11 = arith.subf %1, %10 : vector<8x32xf32>
    %12 = arith.mulf %11, %11 : vector<8x32xf32>
    %cst_7 = arith.constant dense<0.000000e+00> : vector<8xf32>
    %13 = vector.multi_reduction <add>, %12, %cst_7 [1] : vector<8x32xf32> to vector<8xf32>
    %14 = vector.shape_cast %13 : vector<8xf32> to vector<8x1xf32>
    %cst_8 = arith.constant 3.200000e+01 : f32
    %15 = vector.broadcast %cst_8 : f32 to vector<8x1xf32>
    %16 = arith.divf %14, %15 : vector<8x1xf32>
    %17 = vector.broadcast %9 : vector<8x1xf32> to vector<8x32xf32>
    %18 = arith.subf %1, %17 : vector<8x32xf32>
    %cst_9 = arith.constant 9.99999974E-6 : f32
    %19 = vector.broadcast %cst_9 : f32 to vector<8x1xf32>
    %20 = arith.addf %16, %19 : vector<8x1xf32>
    %21 = math.rsqrt %20 : vector<8x1xf32>
    %22 = vector.broadcast %21 : vector<8x1xf32> to vector<8x32xf32>
    %23 = arith.mulf %18, %22 : vector<8x32xf32>
    %24 = vector.shape_cast %3 : vector<32xf32> to vector<1x32xf32>
    %25 = vector.broadcast %24 : vector<1x32xf32> to vector<8x32xf32>
    %26 = arith.mulf %23, %25 : vector<8x32xf32>
    %27 = vector.shape_cast %5 : vector<32xf32> to vector<1x32xf32>
    %28 = vector.broadcast %27 : vector<1x32xf32> to vector<8x32xf32>
    %29 = arith.addf %26, %28 : vector<8x32xf32>
    %30 = arith.truncf %29 : vector<8x32xf32> to vector<8x32xbf16>
    %c0_10 = arith.constant 0 : index
    %c0_11 = arith.constant 0 : index
    %31 = vector.load %arg2[%c0_10, %c0_11] : memref<32x32xbf16, #tpu.memory_space<vmem>>, vector<32x32xbf16>
    %cst_12 = arith.constant dense<0.000000e+00> : vector<8x32xf32>
    %32 = tpu.matmul %30, %31, %cst_12 {dimension_numbers = #tpu.dot_dimension_numbers<[1], [0], [0], [1], [0, 0, 1, 1], [], []>} : vector<8x32xbf16>, vector<32x32xbf16>, vector<8x32xf32> -> vector<8x32xf32>
    %c0_13 = arith.constant 0 : index
    %c0_14 = arith.constant 0 : index
    %33 = vector.load %arg5[%c0_13, %c0_14] : memref<1x32xf32, #tpu.memory_space<vmem>>, vector<1x32xf32>
    %34 = vector.shape_cast %33 : vector<1x32xf32> to vector<32xf32>
    %35 = vector.shape_cast %34 : vector<32xf32> to vector<1x32xf32>
    %36 = vector.broadcast %35 : vector<1x32xf32> to vector<8x32xf32>
    %37 = arith.addf %32, %36 : vector<8x32xf32>
    %c0_15 = arith.constant 0 : index
    %c0_16 = arith.constant 0 : index
    %38 = vector.load %arg3[%c0_15, %c0_16] : memref<32x32xbf16, #tpu.memory_space<vmem>>, vector<32x32xbf16>
    %cst_17 = arith.constant dense<0.000000e+00> : vector<8x32xf32>
    %39 = tpu.matmul %30, %38, %cst_17 {dimension_numbers = #tpu.dot_dimension_numbers<[1], [0], [0], [1], [0, 0, 1, 1], [], []>} : vector<8x32xbf16>, vector<32x32xbf16>, vector<8x32xf32> -> vector<8x32xf32>
    %c0_18 = arith.constant 0 : index
    %c0_19 = arith.constant 0 : index
    %40 = vector.load %arg6[%c0_18, %c0_19] : memref<1x32xf32, #tpu.memory_space<vmem>>, vector<1x32xf32>
    %41 = vector.shape_cast %40 : vector<1x32xf32> to vector<32xf32>
    %42 = vector.shape_cast %41 : vector<32xf32> to vector<1x32xf32>
    %43 = vector.broadcast %42 : vector<1x32xf32> to vector<8x32xf32>
    %44 = arith.addf %39, %43 : vector<8x32xf32>
    %c0_20 = arith.constant 0 : index
    %c0_21 = arith.constant 0 : index
    %45 = vector.load %arg4[%c0_20, %c0_21] : memref<32x32xbf16, #tpu.memory_space<vmem>>, vector<32x32xbf16>
    %cst_22 = arith.constant dense<0.000000e+00> : vector<8x32xf32>
    %46 = tpu.matmul %30, %45, %cst_22 {dimension_numbers = #tpu.dot_dimension_numbers<[1], [0], [0], [1], [0, 0, 1, 1], [], []>} : vector<8x32xbf16>, vector<32x32xbf16>, vector<8x32xf32> -> vector<8x32xf32>
    %c0_23 = arith.constant 0 : index
    %c0_24 = arith.constant 0 : index
    %47 = vector.load %arg7[%c0_23, %c0_24] : memref<1x32xf32, #tpu.memory_space<vmem>>, vector<1x32xf32>
    %48 = vector.shape_cast %47 : vector<1x32xf32> to vector<32xf32>
    %49 = vector.shape_cast %48 : vector<32xf32> to vector<1x32xf32>
    %50 = vector.broadcast %49 : vector<1x32xf32> to vector<8x32xf32>
    %51 = arith.addf %46, %50 : vector<8x32xf32>
    %52 = arith.truncf %37 : vector<8x32xf32> to vector<8x32xbf16>
    %53 = arith.truncf %44 : vector<8x32xf32> to vector<8x32xbf16>
    %54 = arith.truncf %51 : vector<8x32xf32> to vector<8x32xbf16>
    %cst_25 = arith.constant 0.000000e+00 : f32
    %55 = vector.broadcast %cst_25 : f32 to vector<8x32xf32>
    %56 = vector.extract_strided_slice %52 {offsets = [0, 0], sizes = [8, 8], strides = [1, 1]} : vector<8x32xbf16> to vector<8x8xbf16>
    %57 = vector.extract_strided_slice %53 {offsets = [0, 0], sizes = [8, 8], strides = [1, 1]} : vector<8x32xbf16> to vector<8x8xbf16>
    %58 = vector.extract_strided_slice %54 {offsets = [0, 0], sizes = [8, 8], strides = [1, 1]} : vector<8x32xbf16> to vector<8x8xbf16>
    %cst_26 = arith.constant dense<0.000000e+00> : vector<8x8xf32>
    %59 = tpu.matmul %56, %57, %cst_26 {dimension_numbers = #tpu.dot_dimension_numbers<[1], [1], [0], [0], [0, 0, 1, 0], [], []>} : vector<8x8xbf16>, vector<8x8xbf16>, vector<8x8xf32> -> vector<8x8xf32>
    %cst_27 = arith.constant dense<0xFF800000> : vector<8xf32>
    %60 = vector.multi_reduction <maximumf>, %59, %cst_27 [1] : vector<8x8xf32> to vector<8xf32>
    %61 = vector.shape_cast %60 : vector<8xf32> to vector<8x1xf32>
    %62 = vector.broadcast %61 : vector<8x1xf32> to vector<8x8xf32>
    %63 = arith.subf %59, %62 : vector<8x8xf32>
    %64 = math.exp %63 : vector<8x8xf32>
    %cst_28 = arith.constant dense<0.000000e+00> : vector<8xf32>
    %65 = vector.multi_reduction <add>, %64, %cst_28 [1] : vector<8x8xf32> to vector<8xf32>
    %66 = vector.shape_cast %65 : vector<8xf32> to vector<8x1xf32>
    %67 = tpu.reciprocal %66 {approx = true} : vector<8x1xf32> -> vector<8x1xf32>
    %68 = vector.broadcast %67 : vector<8x1xf32> to vector<8x8xf32>
    %69 = arith.mulf %64, %68 : vector<8x8xf32>
    %70 = arith.truncf %69 : vector<8x8xf32> to vector<8x8xbf16>
    %cst_29 = arith.constant dense<0.000000e+00> : vector<8x8xf32>
    %71 = tpu.matmul %70, %58, %cst_29 {dimension_numbers = #tpu.dot_dimension_numbers<[1], [0], [0], [1], [0, 0, 1, 1], [], []>} : vector<8x8xbf16>, vector<8x8xbf16>, vector<8x8xf32> -> vector<8x8xf32>
    %72 = arith.truncf %71 : vector<8x8xf32> to vector<8x8xbf16>
    %c0_30 = arith.constant 0 : index
    %c0_31 = arith.constant 0 : index
    %73 = vector.load %arg8[%c0_30, %c0_31] : memref<32x32xbf16, #tpu.memory_space<vmem>>, vector<8x32xbf16>
    %cst_32 = arith.constant dense<0.000000e+00> : vector<8x32xf32>
    %74 = tpu.matmul %72, %73, %cst_32 {dimension_numbers = #tpu.dot_dimension_numbers<[1], [0], [0], [1], [0, 0, 1, 1], [], []>} : vector<8x8xbf16>, vector<8x32xbf16>, vector<8x32xf32> -> vector<8x32xf32>
    %75 = arith.addf %55, %74 : vector<8x32xf32>
    %76 = vector.extract_strided_slice %52 {offsets = [0, 8], sizes = [8, 8], strides = [1, 1]} : vector<8x32xbf16> to vector<8x8xbf16>
    %77 = vector.extract_strided_slice %53 {offsets = [0, 8], sizes = [8, 8], strides = [1, 1]} : vector<8x32xbf16> to vector<8x8xbf16>
    %78 = vector.extract_strided_slice %54 {offsets = [0, 8], sizes = [8, 8], strides = [1, 1]} : vector<8x32xbf16> to vector<8x8xbf16>
    %cst_33 = arith.constant dense<0.000000e+00> : vector<8x8xf32>
    %79 = tpu.matmul %76, %77, %cst_33 {dimension_numbers = #tpu.dot_dimension_numbers<[1], [1], [0], [0], [0, 0, 1, 0], [], []>} : vector<8x8xbf16>, vector<8x8xbf16>, vector<8x8xf32> -> vector<8x8xf32>
    %cst_34 = arith.constant dense<0xFF800000> : vector<8xf32>
    %80 = vector.multi_reduction <maximumf>, %79, %cst_34 [1] : vector<8x8xf32> to vector<8xf32>
    %81 = vector.shape_cast %80 : vector<8xf32> to vector<8x1xf32>
    %82 = vector.broadcast %81 : vector<8x1xf32> to vector<8x8xf32>
    %83 = arith.subf %79, %82 : vector<8x8xf32>
    %84 = math.exp %83 : vector<8x8xf32>
    %cst_35 = arith.constant dense<0.000000e+00> : vector<8xf32>
    %85 = vector.multi_reduction <add>, %84, %cst_35 [1] : vector<8x8xf32> to vector<8xf32>
    %86 = vector.shape_cast %85 : vector<8xf32> to vector<8x1xf32>
    %87 = tpu.reciprocal %86 {approx = true} : vector<8x1xf32> -> vector<8x1xf32>
    %88 = vector.broadcast %87 : vector<8x1xf32> to vector<8x8xf32>
    %89 = arith.mulf %84, %88 : vector<8x8xf32>
    %90 = arith.truncf %89 : vector<8x8xf32> to vector<8x8xbf16>
    %cst_36 = arith.constant dense<0.000000e+00> : vector<8x8xf32>
    %91 = tpu.matmul %90, %78, %cst_36 {dimension_numbers = #tpu.dot_dimension_numbers<[1], [0], [0], [1], [0, 0, 1, 1], [], []>} : vector<8x8xbf16>, vector<8x8xbf16>, vector<8x8xf32> -> vector<8x8xf32>
    %92 = arith.truncf %91 : vector<8x8xf32> to vector<8x8xbf16>
    %c8 = arith.constant 8 : index
    %c0_37 = arith.constant 0 : index
    %93 = vector.load %arg8[%c8, %c0_37] : memref<32x32xbf16, #tpu.memory_space<vmem>>, vector<8x32xbf16>
    %cst_38 = arith.constant dense<0.000000e+00> : vector<8x32xf32>
    %94 = tpu.matmul %92, %93, %cst_38 {dimension_numbers = #tpu.dot_dimension_numbers<[1], [0], [0], [1], [0, 0, 1, 1], [], []>} : vector<8x8xbf16>, vector<8x32xbf16>, vector<8x32xf32> -> vector<8x32xf32>
    %95 = arith.addf %75, %94 : vector<8x32xf32>
    %96 = vector.extract_strided_slice %52 {offsets = [0, 16], sizes = [8, 8], strides = [1, 1]} : vector<8x32xbf16> to vector<8x8xbf16>
    %97 = vector.extract_strided_slice %53 {offsets = [0, 16], sizes = [8, 8], strides = [1, 1]} : vector<8x32xbf16> to vector<8x8xbf16>
    %98 = vector.extract_strided_slice %54 {offsets = [0, 16], sizes = [8, 8], strides = [1, 1]} : vector<8x32xbf16> to vector<8x8xbf16>
    %cst_39 = arith.constant dense<0.000000e+00> : vector<8x8xf32>
    %99 = tpu.matmul %96, %97, %cst_39 {dimension_numbers = #tpu.dot_dimension_numbers<[1], [1], [0], [0], [0, 0, 1, 0], [], []>} : vector<8x8xbf16>, vector<8x8xbf16>, vector<8x8xf32> -> vector<8x8xf32>
    %cst_40 = arith.constant dense<0xFF800000> : vector<8xf32>
    %100 = vector.multi_reduction <maximumf>, %99, %cst_40 [1] : vector<8x8xf32> to vector<8xf32>
    %101 = vector.shape_cast %100 : vector<8xf32> to vector<8x1xf32>
    %102 = vector.broadcast %101 : vector<8x1xf32> to vector<8x8xf32>
    %103 = arith.subf %99, %102 : vector<8x8xf32>
    %104 = math.exp %103 : vector<8x8xf32>
    %cst_41 = arith.constant dense<0.000000e+00> : vector<8xf32>
    %105 = vector.multi_reduction <add>, %104, %cst_41 [1] : vector<8x8xf32> to vector<8xf32>
    %106 = vector.shape_cast %105 : vector<8xf32> to vector<8x1xf32>
    %107 = tpu.reciprocal %106 {approx = true} : vector<8x1xf32> -> vector<8x1xf32>
    %108 = vector.broadcast %107 : vector<8x1xf32> to vector<8x8xf32>
    %109 = arith.mulf %104, %108 : vector<8x8xf32>
    %110 = arith.truncf %109 : vector<8x8xf32> to vector<8x8xbf16>
    %cst_42 = arith.constant dense<0.000000e+00> : vector<8x8xf32>
    %111 = tpu.matmul %110, %98, %cst_42 {dimension_numbers = #tpu.dot_dimension_numbers<[1], [0], [0], [1], [0, 0, 1, 1], [], []>} : vector<8x8xbf16>, vector<8x8xbf16>, vector<8x8xf32> -> vector<8x8xf32>
    %112 = arith.truncf %111 : vector<8x8xf32> to vector<8x8xbf16>
    %c16 = arith.constant 16 : index
    %c0_43 = arith.constant 0 : index
    %113 = vector.load %arg8[%c16, %c0_43] : memref<32x32xbf16, #tpu.memory_space<vmem>>, vector<8x32xbf16>
    %cst_44 = arith.constant dense<0.000000e+00> : vector<8x32xf32>
    %114 = tpu.matmul %112, %113, %cst_44 {dimension_numbers = #tpu.dot_dimension_numbers<[1], [0], [0], [1], [0, 0, 1, 1], [], []>} : vector<8x8xbf16>, vector<8x32xbf16>, vector<8x32xf32> -> vector<8x32xf32>
    %115 = arith.addf %95, %114 : vector<8x32xf32>
    %116 = vector.extract_strided_slice %52 {offsets = [0, 24], sizes = [8, 8], strides = [1, 1]} : vector<8x32xbf16> to vector<8x8xbf16>
    %117 = vector.extract_strided_slice %53 {offsets = [0, 24], sizes = [8, 8], strides = [1, 1]} : vector<8x32xbf16> to vector<8x8xbf16>
    %118 = vector.extract_strided_slice %54 {offsets = [0, 24], sizes = [8, 8], strides = [1, 1]} : vector<8x32xbf16> to vector<8x8xbf16>
    %cst_45 = arith.constant dense<0.000000e+00> : vector<8x8xf32>
    %119 = tpu.matmul %116, %117, %cst_45 {dimension_numbers = #tpu.dot_dimension_numbers<[1], [1], [0], [0], [0, 0, 1, 0], [], []>} : vector<8x8xbf16>, vector<8x8xbf16>, vector<8x8xf32> -> vector<8x8xf32>
    %cst_46 = arith.constant dense<0xFF800000> : vector<8xf32>
    %120 = vector.multi_reduction <maximumf>, %119, %cst_46 [1] : vector<8x8xf32> to vector<8xf32>
    %121 = vector.shape_cast %120 : vector<8xf32> to vector<8x1xf32>
    %122 = vector.broadcast %121 : vector<8x1xf32> to vector<8x8xf32>
    %123 = arith.subf %119, %122 : vector<8x8xf32>
    %124 = math.exp %123 : vector<8x8xf32>
    %cst_47 = arith.constant dense<0.000000e+00> : vector<8xf32>
    %125 = vector.multi_reduction <add>, %124, %cst_47 [1] : vector<8x8xf32> to vector<8xf32>
    %126 = vector.shape_cast %125 : vector<8xf32> to vector<8x1xf32>
    %127 = tpu.reciprocal %126 {approx = true} : vector<8x1xf32> -> vector<8x1xf32>
    %128 = vector.broadcast %127 : vector<8x1xf32> to vector<8x8xf32>
    %129 = arith.mulf %124, %128 : vector<8x8xf32>
    %130 = arith.truncf %129 : vector<8x8xf32> to vector<8x8xbf16>
    %cst_48 = arith.constant dense<0.000000e+00> : vector<8x8xf32>
    %131 = tpu.matmul %130, %118, %cst_48 {dimension_numbers = #tpu.dot_dimension_numbers<[1], [0], [0], [1], [0, 0, 1, 1], [], []>} : vector<8x8xbf16>, vector<8x8xbf16>, vector<8x8xf32> -> vector<8x8xf32>
    %132 = arith.truncf %131 : vector<8x8xf32> to vector<8x8xbf16>
    %c24 = arith.constant 24 : index
    %c0_49 = arith.constant 0 : index
    %133 = vector.load %arg8[%c24, %c0_49] : memref<32x32xbf16, #tpu.memory_space<vmem>>, vector<8x32xbf16>
    %cst_50 = arith.constant dense<0.000000e+00> : vector<8x32xf32>
    %134 = tpu.matmul %132, %133, %cst_50 {dimension_numbers = #tpu.dot_dimension_numbers<[1], [0], [0], [1], [0, 0, 1, 1], [], []>} : vector<8x8xbf16>, vector<8x32xbf16>, vector<8x32xf32> -> vector<8x32xf32>
    %135 = arith.addf %115, %134 : vector<8x32xf32>
    %136 = arith.addf %1, %135 : vector<8x32xf32>
    %c0_51 = arith.constant 0 : index
    %c0_52 = arith.constant 0 : index
    %137 = vector.load %arg9[%c0_51, %c0_52] : memref<1x32xf32, #tpu.memory_space<vmem>>, vector<1x32xf32>
    %138 = vector.shape_cast %137 : vector<1x32xf32> to vector<32xf32>
    %139 = vector.shape_cast %138 : vector<32xf32> to vector<1x32xf32>
    %140 = vector.broadcast %139 : vector<1x32xf32> to vector<8x32xf32>
    %141 = arith.addf %136, %140 : vector<8x32xf32>
    %c0_53 = arith.constant 0 : index
    %c0_54 = arith.constant 0 : index
    %142 = vector.load %arg12[%c0_53, %c0_54] : memref<1x32xf32, #tpu.memory_space<vmem>>, vector<1x32xf32>
    %143 = vector.shape_cast %142 : vector<1x32xf32> to vector<32xf32>
    %c0_55 = arith.constant 0 : index
    %c0_56 = arith.constant 0 : index
    %144 = vector.load %arg13[%c0_55, %c0_56] : memref<1x32xf32, #tpu.memory_space<vmem>>, vector<1x32xf32>
    %145 = vector.shape_cast %144 : vector<1x32xf32> to vector<32xf32>
    %cst_57 = arith.constant dense<0.000000e+00> : vector<8xf32>
    %146 = vector.multi_reduction <add>, %141, %cst_57 [1] : vector<8x32xf32> to vector<8xf32>
    %147 = vector.shape_cast %146 : vector<8xf32> to vector<8x1xf32>
    %cst_58 = arith.constant 3.200000e+01 : f32
    %148 = vector.broadcast %cst_58 : f32 to vector<8x1xf32>
    %149 = arith.divf %147, %148 : vector<8x1xf32>
    %150 = vector.broadcast %149 : vector<8x1xf32> to vector<8x32xf32>
    %151 = arith.subf %141, %150 : vector<8x32xf32>
    %152 = arith.mulf %151, %151 : vector<8x32xf32>
    %cst_59 = arith.constant dense<0.000000e+00> : vector<8xf32>
    %153 = vector.multi_reduction <add>, %152, %cst_59 [1] : vector<8x32xf32> to vector<8xf32>
    %154 = vector.shape_cast %153 : vector<8xf32> to vector<8x1xf32>
    %cst_60 = arith.constant 3.200000e+01 : f32
    %155 = vector.broadcast %cst_60 : f32 to vector<8x1xf32>
    %156 = arith.divf %154, %155 : vector<8x1xf32>
    %157 = vector.broadcast %149 : vector<8x1xf32> to vector<8x32xf32>
    %158 = arith.subf %141, %157 : vector<8x32xf32>
    %cst_61 = arith.constant 9.99999974E-6 : f32
    %159 = vector.broadcast %cst_61 : f32 to vector<8x1xf32>
    %160 = arith.addf %156, %159 : vector<8x1xf32>
    %161 = math.rsqrt %160 : vector<8x1xf32>
    %162 = vector.broadcast %161 : vector<8x1xf32> to vector<8x32xf32>
    %163 = arith.mulf %158, %162 : vector<8x32xf32>
    %164 = vector.shape_cast %143 : vector<32xf32> to vector<1x32xf32>
    %165 = vector.broadcast %164 : vector<1x32xf32> to vector<8x32xf32>
    %166 = arith.mulf %163, %165 : vector<8x32xf32>
    %167 = vector.shape_cast %145 : vector<32xf32> to vector<1x32xf32>
    %168 = vector.broadcast %167 : vector<1x32xf32> to vector<8x32xf32>
    %169 = arith.addf %166, %168 : vector<8x32xf32>
    %170 = arith.truncf %169 : vector<8x32xf32> to vector<8x32xbf16>
    %c0_62 = arith.constant 0 : index
    %c0_63 = arith.constant 0 : index
    %171 = vector.load %arg14[%c0_62, %c0_63] : memref<32x128xbf16, #tpu.memory_space<vmem>>, vector<32x128xbf16>
    %cst_64 = arith.constant dense<0.000000e+00> : vector<8x128xf32>
    %172 = tpu.matmul %170, %171, %cst_64 {dimension_numbers = #tpu.dot_dimension_numbers<[1], [0], [0], [1], [0, 0, 1, 1], [], []>} : vector<8x32xbf16>, vector<32x128xbf16>, vector<8x128xf32> -> vector<8x128xf32>
    %c0_65 = arith.constant 0 : index
    %c0_66 = arith.constant 0 : index
    %173 = vector.load %arg15[%c0_65, %c0_66] : memref<1x128xf32, #tpu.memory_space<vmem>>, vector<1x128xf32>
    %174 = vector.shape_cast %173 : vector<1x128xf32> to vector<128xf32>
    %175 = vector.shape_cast %174 : vector<128xf32> to vector<1x128xf32>
    %176 = vector.broadcast %175 : vector<1x128xf32> to vector<8x128xf32>
    %177 = arith.addf %172, %176 : vector<8x128xf32>
    %cst_67 = arith.constant 1.702000e+00 : f32
    %178 = vector.broadcast %cst_67 : f32 to vector<8x128xf32>
    %179 = arith.mulf %178, %177 : vector<8x128xf32>
    %180 = arith.negf %179 : vector<8x128xf32>
    %181 = math.exp %180 : vector<8x128xf32>
    %cst_68 = arith.constant 1.000000e+00 : f32
    %182 = vector.broadcast %cst_68 : f32 to vector<8x128xf32>
    %183 = arith.addf %182, %181 : vector<8x128xf32>
    %184 = arith.divf %182, %183 : vector<8x128xf32>
    %185 = arith.mulf %177, %184 : vector<8x128xf32>
    %186 = arith.truncf %185 : vector<8x128xf32> to vector<8x128xbf16>
    %c0_69 = arith.constant 0 : index
    %c0_70 = arith.constant 0 : index
    %187 = vector.load %arg16[%c0_69, %c0_70] : memref<128x32xbf16, #tpu.memory_space<vmem>>, vector<128x32xbf16>
    %cst_71 = arith.constant dense<0.000000e+00> : vector<8x32xf32>
    %188 = tpu.matmul %186, %187, %cst_71 {dimension_numbers = #tpu.dot_dimension_numbers<[1], [0], [0], [1], [0, 0, 1, 1], [], []>} : vector<8x128xbf16>, vector<128x32xbf16>, vector<8x32xf32> -> vector<8x32xf32>
    %189 = arith.addf %141, %188 : vector<8x32xf32>
    %c0_72 = arith.constant 0 : index
    %c0_73 = arith.constant 0 : index
    %190 = vector.load %arg17[%c0_72, %c0_73] : memref<1x32xf32, #tpu.memory_space<vmem>>, vector<1x32xf32>
    %191 = vector.shape_cast %190 : vector<1x32xf32> to vector<32xf32>
    %192 = vector.shape_cast %191 : vector<32xf32> to vector<1x32xf32>
    %193 = vector.broadcast %192 : vector<1x32xf32> to vector<8x32xf32>
    %194 = arith.addf %189, %193 : vector<8x32xf32>
    %c0_74 = arith.constant 0 : index
    %c0_75 = arith.constant 0 : index
    %c0_76 = arith.constant 0 : index
    %195 = vector.load %arg18[%c0_74, %c0_75, %c0_76] : memref<1x8x32xf32, #tpu.memory_space<vmem>>, vector<1x8x32xf32>
    %196 = vector.shape_cast %195 : vector<1x8x32xf32> to vector<8x32xf32>
    %197 = vector.shape_cast %194 : vector<8x32xf32> to vector<1x8x32xf32>
    tpu.vector_store %arg18[%c0_74, %c0_75, %c0_76], %197 {strides = array<i32>} : memref<1x8x32xf32, #tpu.memory_space<vmem>>, vector<1x8x32xf32>,
    return
  }
  func.func @transform_0(%arg0: i32) -> (i32, i32, i32) {
    %c0_i32 = arith.constant 0 : i32
    %c0_i32_0 = arith.constant 0 : i32
    %c0_i32_1 = arith.constant 0 : i32
    return %arg0, %c0_i32, %c0_i32_0 : i32, i32, i32
  }
  func.func @transform_1(%arg0: i32) -> (i32, i32) {
    %c0_i32 = arith.constant 0 : i32
    %c0_i32_0 = arith.constant 0 : i32
    %c0_i32_1 = arith.constant 0 : i32
    return %c0_i32, %c0_i32_0 : i32, i32
  }
  func.func @transform_2(%arg0: i32) -> (i32, i32) {
    %c0_i32 = arith.constant 0 : i32
    %c0_i32_0 = arith.constant 0 : i32
    %c0_i32_1 = arith.constant 0 : i32
    return %c0_i32, %c0_i32_0 : i32, i32
  }
  func.func @transform_3(%arg0: i32) -> (i32, i32) {
    %c0_i32 = arith.constant 0 : i32
    %c0_i32_0 = arith.constant 0 : i32
    %c0_i32_1 = arith.constant 0 : i32
    return %c0_i32, %c0_i32_0 : i32, i32
  }
  func.func @transform_4(%arg0: i32) -> (i32, i32) {
    %c0_i32 = arith.constant 0 : i32
    %c0_i32_0 = arith.constant 0 : i32
    %c0_i32_1 = arith.constant 0 : i32
    return %c0_i32, %c0_i32_0 : i32, i32
  }
  func.func @transform_5(%arg0: i32) -> (i32, i32) {
    %c0_i32 = arith.constant 0 : i32
    %c0_i32_0 = arith.constant 0 : i32
    %c0_i32_1 = arith.constant 0 : i32
    return %c0_i32, %c0_i32_0 : i32, i32
  }
  func.func @transform_6(%arg0: i32) -> (i32, i32) {
    %c0_i32 = arith.constant 0 : i32
    %c0_i32_0 = arith.constant 0 : i32
    %c0_i32_1 = arith.constant 0 : i32
    return %c0_i32, %c0_i32_0 : i32, i32
  }
  func.func @transform_7(%arg0: i32) -> (i32, i32) {
    %c0_i32 = arith.constant 0 : i32
    %c0_i32_0 = arith.constant 0 : i32
    %c0_i32_1 = arith.constant 0 : i32
    return %c0_i32, %c0_i32_0 : i32, i32
  }
  func.func @transform_8(%arg0: i32) -> (i32, i32) {
    %c0_i32 = arith.constant 0 : i32
    %c0_i32_0 = arith.constant 0 : i32
    %c0_i32_1 = arith.constant 0 : i32
    return %c0_i32, %c0_i32_0 : i32, i32
  }
  func.func @transform_9(%arg0: i32) -> (i32, i32) {
    %c0_i32 = arith.constant 0 : i32
    %c0_i32_0 = arith.constant 0 : i32
    %c0_i32_1 = arith.constant 0 : i32
    return %c0_i32, %c0_i32_0 : i32, i32
  }
  func.func @transform_10(%arg0: i32) -> (i32, i32) {
    %c0_i32 = arith.constant 0 : i32
    %c0_i32_0 = arith.constant 0 : i32
    %c0_i32_1 = arith.constant 0 : i32
    return %c0_i32, %c0_i32_0 : i32, i32
  }
  func.func @transform_11(%arg0: i32) -> (i32, i32) {
    %c0_i32 = arith.constant 0 : i32
    %c0_i32_0 = arith.constant 0 : i32
    %c0_i32_1 = arith.constant 0 : i32
    return %c0_i32, %c0_i32_0 : i32, i32
  }
  func.func @transform_12(%arg0: i32) -> (i32, i32) {
    %c0_i32 = arith.constant 0 : i32
    %c0_i32_0 = arith.constant 0 : i32
    %c0_i32_1 = arith.constant 0 : i32
    return %c0_i32, %c0_i32_0 : i32, i32
  }
  func.func @transform_13(%arg0: i32) -> (i32, i32) {
    %c0_i32 = arith.constant 0 : i32
    %c0_i32_0 = arith.constant 0 : i32
    %c0_i32_1 = arith.constant 0 : i32
    return %c0_i32, %c0_i32_0 : i32, i32
  }
  func.func @transform_14(%arg0: i32) -> (i32, i32) {
    %c0_i32 = arith.constant 0 : i32
    %c0_i32_0 = arith.constant 0 : i32
    %c0_i32_1 = arith.constant 0 : i32
    return %c0_i32, %c0_i32_0 : i32, i32
  }
  func.func @transform_15(%arg0: i32) -> (i32, i32) {
    %c0_i32 = arith.constant 0 : i32
    %c0_i32_0 = arith.constant 0 : i32
    %c0_i32_1 = arith.constant 0 : i32
    return %c0_i32, %c0_i32_0 : i32, i32
  }
  func.func @transform_16(%arg0: i32) -> (i32, i32) {
    %c0_i32 = arith.constant 0 : i32
    %c0_i32_0 = arith.constant 0 : i32
    %c0_i32_1 = arith.constant 0 : i32
    return %c0_i32, %c0_i32_0 : i32, i32
  }
  func.func @transform_17(%arg0: i32) -> (i32, i32, i32) {
    %c0_i32 = arith.constant 0 : i32
    %c0_i32_0 = arith.constant 0 : i32
    %c0_i32_1 = arith.constant 0 : i32
    return %arg0, %c0_i32, %c0_i32_0 : i32, i32, i32
  }
}

</mosaic_0001>

<llo_original>
// kernel: tpu_custom_call.1
$region0: #{tpu_custom_call.1}
  #allocation0 [shape = 'u32[]', space=smem, size = 0x4, offset = 0x4, fixed_abs, tag = 'smem constant byte address 0x4 - core index']
  #allocation1 [shape = 'u32[144,128]{1,0:T(1,128)}', space=vmem, size = 0x12000, scoped, tag = 'internal scratch']
  %s0 = inlined_call_operand.vmem [shape: f32[2,8,32], index: 0, kind: input, shape index: {}]
  %s1 = inlined_call_operand.vmem [shape: bf16[32,32], index: 1, kind: input, shape index: {}]
  %s2 = inlined_call_operand.vmem [shape: bf16[32,32], index: 2, kind: input, shape index: {}]
  %s3 = inlined_call_operand.vmem [shape: bf16[32,32], index: 3, kind: input, shape index: {}]
  %s4 = inlined_call_operand.vmem [shape: f32[1,32], index: 4, kind: input, shape index: {}]
  %s5 = inlined_call_operand.vmem [shape: f32[1,32], index: 5, kind: input, shape index: {}]
  %s6 = inlined_call_operand.hbm [shape: f32[1,32], index: 6, kind: input, shape index: {}]
  %s7 = inlined_call_operand.vmem [shape: bf16[32,32], index: 7, kind: input, shape index: {}]
  %s8 = inlined_call_operand.hbm [shape: f32[1,32], index: 8, kind: input, shape index: {}]
  %s9 = inlined_call_operand.hbm [shape: f32[1,32], index: 9, kind: input, shape index: {}]
  %s10 = inlined_call_operand.vmem [shape: f32[1,32], index: 10, kind: input, shape index: {}]
  %s11 = inlined_call_operand.vmem [shape: f32[1,32], index: 11, kind: input, shape index: {}]
  %s12 = inlined_call_operand.vmem [shape: f32[1,32], index: 12, kind: input, shape index: {}]
  %s13 = inlined_call_operand.vmem [shape: bf16[32,128], index: 13, kind: input, shape index: {}]
  %s14 = inlined_call_operand.vmem [shape: f32[1,128], index: 14, kind: input, shape index: {}]
  %s15 = inlined_call_operand.vmem [shape: bf16[128,32], index: 15, kind: input, shape index: {}]
  %s16 = inlined_call_operand.vmem [shape: f32[1,32], index: 16, kind: input, shape index: {}]
  %s17 = inlined_call_operand.hbm [shape: f32[2,8,32], index: 17, kind: output, shape index: {}]
  %s18 = sld [smem:[#allocation0]]
  $region113: #{tpu_custom_call.1} parent=0
    _
  %s20 = ssub.s32 1, %s18
  %s21 = scalar_select 0, %s20, %s18
  $region1: #{tpu_custom_call.1} parent=0
    #allocation2 [shape = 'u8[512]{0}', space=vmem, size = 0x400, scoped, tag = 'input window, operand 6, single buffered']
    #allocation3 [shape = 's32[2]{0}', space=sflag, size = 0x8, scoped, tag = 'scoped memory for tpu_custom_call.1']
    #allocation4 [shape = 's32[2]{0}', space=sflag, size = 0x8, scoped, tag = 'scoped memory for tpu_custom_call.1']
    #allocation5 [shape = 'u8[512]{0}', space=vmem, size = 0x400, scoped, tag = 'input window, operand 8, single buffered']
    #allocation6 [shape = 's32[1]{0}', space=sflag, size = 0x4, scoped, tag = 'scoped memory for tpu_custom_call.1']
    #allocation7 [shape = 'u8[512]{0}', space=vmem, size = 0x400, scoped, tag = 'input window, operand 9, single buffered']
    #allocation8 [shape = 'u8[8192]{0}', space=vmem, size = 0x2000, scoped, tag = 'output window, operand 0']
    %22 = vsyncpa [#allocation3], 0
    %23 = vsyncpa [#allocation6], 0
    %24 = vsyncpa [#allocation4], 0
    %s25 = scalar_lea.sflag [#allocation4], 1
    %26 = vsyncpa %s25, 0
    loop: start=0, step=1, limit=4
    $region2: #{tpu_custom_call.1} parent=1 // loop_pre_header
      _
    $region3: #{tpu_custom_call.1} parent=1 // loop_header
      %s28 = sphi 0, %s32
      %p29 = scmp.ge.s32.totalorder %s28, 4
      %s38 = sphi 0, %s40
      %s41 = sphi 0, %s38
      %s42 = sphi 0, %s41
      %s58 = sphi 0, %s42
      %s62 = sphi 0, %s62
      %s64 = sphi 0, %s62
      %s65 = sphi 0, %s64
      %s79 = sphi 0, %s65
      %s83 = sphi 0, %s83
      %s85 = sphi 0, %s83
      %s86 = sphi 0, %s85
      %s100 = sphi 0, %s86
      %s104 = sphi 0, %s104
      %s106 = sphi 0, %s104
      %s107 = sphi 0, %s106
      %s121 = sphi 0, %s107
      %s125 = sphi 0, %s125
      %s127 = sphi 0, %s125
      %s128 = sphi 0, %s127
      %s142 = sphi 0, %s128
      %s146 = sphi 0, %s146
      %s148 = sphi 0, %s146
      %s149 = sphi 0, %s148
      %s163 = sphi 0, %s149
      %s167 = sphi 0, %s167
      %s169 = sphi 0, %s167
      %s170 = sphi 0, %s169
      %s184 = sphi 0, %s170
      %s188 = sphi 0, %s188
      %s190 = sphi 0, %s188
      %s191 = sphi 0, %s190
      %s205 = sphi 0, %s191
      %s209 = sphi 0, %s209
      %s211 = sphi 0, %s209
      %s212 = sphi 0, %s211
      %s226 = sphi 0, %s212
      %s230 = sphi 0, %s230
      %s232 = sphi 0, %s230
      %s233 = sphi 0, %s232
      %s247 = sphi 0, %s233
      %s251 = sphi 0, %s251
      %s253 = sphi 0, %s251
      %s254 = sphi 0, %s253
      %s268 = sphi 0, %s254
      %s272 = sphi 0, %s272
      %s274 = sphi 0, %s272
      %s275 = sphi 0, %s274
      %s289 = sphi 0, %s275
      %s293 = sphi 0, %s293
      %s295 = sphi 0, %s293
      %s296 = sphi 0, %s295
      %s310 = sphi 0, %s296
      %s314 = sphi 0, %s314
      %s316 = sphi 0, %s314
      %s317 = sphi 0, %s316
      %s331 = sphi 0, %s317
      %s335 = sphi 0, %s335
      %s337 = sphi 0, %s335
      %s338 = sphi 0, %s337
      %s352 = sphi 0, %s338
      %s356 = sphi 0, %s356
      %s358 = sphi 0, %s356
      %s359 = sphi 0, %s358
      %s373 = sphi 0, %s359
      %s377 = sphi 0, %s377
      %s379 = sphi 0, %s377
      %s380 = sphi 0, %s379
      %s394 = sphi 0, %s380
      %s400 = sphi 0, %s402
      %s403 = sphi 0, %s400
      %s404 = sphi 0, %s403
      %s420 = sphi 0, %s404
    $region4: #{tpu_custom_call.1} parent=1 // loop_header_branch
      %31 = sbr.rel (%p29) target = $region8
    $region5: #{tpu_custom_call.1} parent=1 // loop_body
      %s33 = ssub.s32 %s28, 1
      %s34 = ssub.s32 %s28, 2
      %s35 = sadd.s32 %s28, 1
      %s36 = ssub.s32 %s28, %s35
      %p37 = scmp.eq.s32.totalorder %s36, 0
      %s39 = sadd.s32 %s38, 1
      %s40 = scalar_select %p37, %s38, %s39
      %p43 = pneg %p37
      %p44 = scmp.eq.s32.totalorder %s28, 1
      %p45 = por %p43, %p44
      %p46 = scmp.ne.s32.totalorder %s38, %s41
      %p47 = scmp.eq.s32.totalorder %s28, 0
      %p48 = por %p46, %p47
      %p49 = scmp.ne.s32.totalorder %s38, %s41
      %p50 = scmp.eq.s32.totalorder %s33, 1
      %p51 = por %p49, %p50
      %p52 = scmp.ne.s32.totalorder %s41, %s42
      %p53 = scmp.eq.s32.totalorder %s33, 0
      %p54 = por %p52, %p53
      %p55 = scmp.ne.s32.totalorder %s41, %s42
      %p56 = scmp.eq.s32.totalorder %s34, 1
      %p57 = por %p55, %p56
      %p59 = scmp.ne.s32.totalorder %s42, %s58
      %p60 = scmp.eq.s32.totalorder %s34, 0
      %p61 = por %p59, %p60
      %s63 = sadd.s32 %s62, 1
      %p66 = scmp.eq.s32.totalorder %s28, 1
      %p67 = scmp.ne.s32.totalorder %s62, %s64
      %p68 = scmp.eq.s32.totalorder %s28, 0
      %p69 = por %p67, %p68
      %p70 = scmp.ne.s32.totalorder %s62, %s64
      %p71 = scmp.eq.s32.totalorder %s33, 1
      %p72 = por %p70, %p71
      %p73 = scmp.ne.s32.totalorder %s64, %s65
      %p74 = scmp.eq.s32.totalorder %s33, 0
      %p75 = por %p73, %p74
      %p76 = scmp.ne.s32.totalorder %s64, %s65
      %p77 = scmp.eq.s32.totalorder %s34, 1
      %p78 = por %p76, %p77
      %p80 = scmp.ne.s32.totalorder %s65, %s79
      %p81 = scmp.eq.s32.totalorder %s34, 0
      %p82 = por %p80, %p81
      %s84 = sadd.s32 %s83, 1
      %p87 = scmp.eq.s32.totalorder %s28, 1
      %p88 = scmp.ne.s32.totalorder %s83, %s85
      %p89 = scmp.eq.s32.totalorder %s28, 0
      %p90 = por %p88, %p89
      %p91 = scmp.ne.s32.totalorder %s83, %s85
      %p92 = scmp.eq.s32.totalorder %s33, 1
      %p93 = por %p91, %p92
      %p94 = scmp.ne.s32.totalorder %s85, %s86
      %p95 = scmp.eq.s32.totalorder %s33, 0
      %p96 = por %p94, %p95
      %p97 = scmp.ne.s32.totalorder %s85, %s86
      %p98 = scmp.eq.s32.totalorder %s34, 1
      %p99 = por %p97, %p98
      %p101 = scmp.ne.s32.totalorder %s86, %s100
      %p102 = scmp.eq.s32.totalorder %s34, 0
      %p103 = por %p101, %p102
      %s105 = sadd.s32 %s104, 1
      %p108 = scmp.eq.s32.totalorder %s28, 1
      %p109 = scmp.ne.s32.totalorder %s104, %s106
      %p110 = scmp.eq.s32.totalorder %s28, 0
      %p111 = por %p109, %p110
      %p112 = scmp.ne.s32.totalorder %s104, %s106
      %p113 = scmp.eq.s32.totalorder %s33, 1
      %p114 = por %p112, %p113
      %p115 = scmp.ne.s32.totalorder %s106, %s107
      %p116 = scmp.eq.s32.totalorder %s33, 0
      %p117 = por %p115, %p116
      %p118 = scmp.ne.s32.totalorder %s106, %s107
      %p119 = scmp.eq.s32.totalorder %s34, 1
      %p120 = por %p118, %p119
      %p122 = scmp.ne.s32.totalorder %s107, %s121
      %p123 = scmp.eq.s32.totalorder %s34, 0
      %p124 = por %p122, %p123
      %s126 = sadd.s32 %s125, 1
      %p129 = scmp.eq.s32.totalorder %s28, 1
      %p130 = scmp.ne.s32.totalorder %s125, %s127
      %p131 = scmp.eq.s32.totalorder %s28, 0
      %p132 = por %p130, %p131
      %p133 = scmp.ne.s32.totalorder %s125, %s127
      %p134 = scmp.eq.s32.totalorder %s33, 1
      %p135 = por %p133, %p134
      %p136 = scmp.ne.s32.totalorder %s127, %s128
      %p137 = scmp.eq.s32.totalorder %s33, 0
      %p138 = por %p136, %p137
      %p139 = scmp.ne.s32.totalorder %s127, %s128
      %p140 = scmp.eq.s32.totalorder %s34, 1
      %p141 = por %p139, %p140
      %p143 = scmp.ne.s32.totalorder %s128, %s142
      %p144 = scmp.eq.s32.totalorder %s34, 0
      %p145 = por %p143, %p144
      %s147 = sadd.s32 %s146, 1
      %p150 = scmp.eq.s32.totalorder %s28, 1
      %p151 = scmp.ne.s32.totalorder %s146, %s148
      %p152 = scmp.eq.s32.totalorder %s28, 0
      %p153 = por %p151, %p152
      %p154 = scmp.ne.s32.totalorder %s146, %s148
      %p155 = scmp.eq.s32.totalorder %s33, 1
      %p156 = por %p154, %p155
      %p157 = scmp.ne.s32.totalorder %s148, %s149
      %p158 = scmp.eq.s32.totalorder %s33, 0
      %p159 = por %p157, %p158
      %p160 = scmp.ne.s32.totalorder %s148, %s149
      %p161 = scmp.eq.s32.totalorder %s34, 1
      %p162 = por %p160, %p161
      %p164 = scmp.ne.s32.totalorder %s149, %s163
      %p165 = scmp.eq.s32.totalorder %s34, 0
      %p166 = por %p164, %p165
      %s168 = sadd.s32 %s167, 1
      %p171 = scmp.eq.s32.totalorder %s28, 1
      %p172 = scmp.ne.s32.totalorder %s167, %s169
      %p173 = scmp.eq.s32.totalorder %s28, 0
      %p174 = por %p172, %p173
      %p175 = scmp.ne.s32.totalorder %s167, %s169
      %p176 = scmp.eq.s32.totalorder %s33, 1
      %p177 = por %p175, %p176
      %p178 = scmp.ne.s32.totalorder %s169, %s170
      %p179 = scmp.eq.s32.totalorder %s33, 0
      %p180 = por %p178, %p179
      %p181 = scmp.ne.s32.totalorder %s169, %s170
      %p182 = scmp.eq.s32.totalorder %s34, 1
      %p183 = por %p181, %p182
      %p185 = scmp.ne.s32.totalorder %s170, %s184
      %p186 = scmp.eq.s32.totalorder %s34, 0
      %p187 = por %p185, %p186
      %s189 = sadd.s32 %s188, 1
      %p192 = scmp.eq.s32.totalorder %s28, 1
      %p193 = scmp.ne.s32.totalorder %s188, %s190
      %p194 = scmp.eq.s32.totalorder %s28, 0
      %p195 = por %p193, %p194
      %p196 = scmp.ne.s32.totalorder %s188, %s190
      %p197 = scmp.eq.s32.totalorder %s33, 1
      %p198 = por %p196, %p197
      %p199 = scmp.ne.s32.totalorder %s190, %s191
      %p200 = scmp.eq.s32.totalorder %s33, 0
      %p201 = por %p199, %p200
      %p202 = scmp.ne.s32.totalorder %s190, %s191
      %p203 = scmp.eq.s32.totalorder %s34, 1
      %p204 = por %p202, %p203
      %p206 = scmp.ne.s32.totalorder %s191, %s205
      %p207 = scmp.eq.s32.totalorder %s34, 0
      %p208 = por %p206, %p207
      %s210 = sadd.s32 %s209, 1
      %p213 = scmp.eq.s32.totalorder %s28, 1
      %p214 = scmp.ne.s32.totalorder %s209, %s211
      %p215 = scmp.eq.s32.totalorder %s28, 0
      %p216 = por %p214, %p215
      %p217 = scmp.ne.s32.totalorder %s209, %s211
      %p218 = scmp.eq.s32.totalorder %s33, 1
      %p219 = por %p217, %p218
      %p220 = scmp.ne.s32.totalorder %s211, %s212
      %p221 = scmp.eq.s32.totalorder %s33, 0
      %p222 = por %p220, %p221
      %p223 = scmp.ne.s32.totalorder %s211, %s212
      %p224 = scmp.eq.s32.totalorder %s34, 1
      %p225 = por %p223, %p224
      %p227 = scmp.ne.s32.totalorder %s212, %s226
      %p228 = scmp.eq.s32.totalorder %s34, 0
      %p229 = por %p227, %p228
      %s231 = sadd.s32 %s230, 1
      %p234 = scmp.eq.s32.totalorder %s28, 1
      %p235 = scmp.ne.s32.totalorder %s230, %s232
      %p236 = scmp.eq.s32.totalorder %s28, 0
      %p237 = por %p235, %p236
      %p238 = scmp.ne.s32.totalorder %s230, %s232
      %p239 = scmp.eq.s32.totalorder %s33, 1
      %p240 = por %p238, %p239
      %p241 = scmp.ne.s32.totalorder %s232, %s233
      %p242 = scmp.eq.s32.totalorder %s33, 0
      %p243 = por %p241, %p242
      %p244 = scmp.ne.s32.totalorder %s232, %s233
      %p245 = scmp.eq.s32.totalorder %s34, 1
      %p246 = por %p244, %p245
      %p248 = scmp.ne.s32.totalorder %s233, %s247
      %p249 = scmp.eq.s32.totalorder %s34, 0
      %p250 = por %p248, %p249
      %s252 = sadd.s32 %s251, 1
      %p255 = scmp.eq.s32.totalorder %s28, 1
      %p256 = scmp.ne.s32.totalorder %s251, %s253
      %p257 = scmp.eq.s32.totalorder %s28, 0
      %p258 = por %p256, %p257
      %p259 = scmp.ne.s32.totalorder %s251, %s253
      %p260 = scmp.eq.s32.totalorder %s33, 1
      %p261 = por %p259, %p260
      %p262 = scmp.ne.s32.totalorder %s253, %s254
      %p263 = scmp.eq.s32.totalorder %s33, 0
      %p264 = por %p262, %p263
      %p265 = scmp.ne.s32.totalorder %s253, %s254
      %p266 = scmp.eq.s32.totalorder %s34, 1
      %p267 = por %p265, %p266
      %p269 = scmp.ne.s32.totalorder %s254, %s268
      %p270 = scmp.eq.s32.totalorder %s34, 0
      %p271 = por %p269, %p270
      %s273 = sadd.s32 %s272, 1
      %p276 = scmp.eq.s32.totalorder %s28, 1
      %p277 = scmp.ne.s32.totalorder %s272, %s274
      %p278 = scmp.eq.s32.totalorder %s28, 0
      %p279 = por %p277, %p278
      %p280 = scmp.ne.s32.totalorder %s272, %s274
      %p281 = scmp.eq.s32.totalorder %s33, 1
      %p282 = por %p280, %p281
      %p283 = scmp.ne.s32.totalorder %s274, %s275
      %p284 = scmp.eq.s32.totalorder %s33, 0
      %p285 = por %p283, %p284
      %p286 = scmp.ne.s32.totalorder %s274, %s275
      %p287 = scmp.eq.s32.totalorder %s34, 1
      %p288 = por %p286, %p287
      %p290 = scmp.ne.s32.totalorder %s275, %s289
      %p291 = scmp.eq.s32.totalorder %s34, 0
      %p292 = por %p290, %p291
      %s294 = sadd.s32 %s293, 1
      %p297 = scmp.eq.s32.totalorder %s28, 1
      %p298 = scmp.ne.s32.totalorder %s293, %s295
      %p299 = scmp.eq.s32.totalorder %s28, 0
      %p300 = por %p298, %p299
      %p301 = scmp.ne.s32.totalorder %s293, %s295
      %p302 = scmp.eq.s32.totalorder %s33, 1
      %p303 = por %p301, %p302
      %p304 = scmp.ne.s32.totalorder %s295, %s296
      %p305 = scmp.eq.s32.totalorder %s33, 0
      %p306 = por %p304, %p305
      %p307 = scmp.ne.s32.totalorder %s295, %s296
      %p308 = scmp.eq.s32.totalorder %s34, 1
      %p309 = por %p307, %p308
      %p311 = scmp.ne.s32.totalorder %s296, %s310
      %p312 = scmp.eq.s32.totalorder %s34, 0
      %p313 = por %p311, %p312
      %s315 = sadd.s32 %s314, 1
      %p318 = scmp.eq.s32.totalorder %s28, 1
      %p319 = scmp.ne.s32.totalorder %s314, %s316
      %p320 = scmp.eq.s32.totalorder %s28, 0
      %p321 = por %p319, %p320
      %p322 = scmp.ne.s32.totalorder %s314, %s316
      %p323 = scmp.eq.s32.totalorder %s33, 1
      %p324 = por %p322, %p323
      %p325 = scmp.ne.s32.totalorder %s316, %s317
      %p326 = scmp.eq.s32.totalorder %s33, 0
      %p327 = por %p325, %p326
      %p328 = scmp.ne.s32.totalorder %s316, %s317
      %p329 = scmp.eq.s32.totalorder %s34, 1
      %p330 = por %p328, %p329
      %p332 = scmp.ne.s32.totalorder %s317, %s331
      %p333 = scmp.eq.s32.totalorder %s34, 0
      %p334 = por %p332, %p333
      %s336 = sadd.s32 %s335, 1
      %p339 = scmp.eq.s32.totalorder %s28, 1
      %p340 = scmp.ne.s32.totalorder %s335, %s337
      %p341 = scmp.eq.s32.totalorder %s28, 0
      %p342 = por %p340, %p341
      %p343 = scmp.ne.s32.totalorder %s335, %s337
      %p344 = scmp.eq.s32.totalorder %s33, 1
      %p345 = por %p343, %p344
      %p346 = scmp.ne.s32.totalorder %s337, %s338
      %p347 = scmp.eq.s32.totalorder %s33, 0
      %p348 = por %p346, %p347
      %p349 = scmp.ne.s32.totalorder %s337, %s338
      %p350 = scmp.eq.s32.totalorder %s34, 1
      %p351 = por %p349, %p350
      %p353 = scmp.ne.s32.totalorder %s338, %s352
      %p354 = scmp.eq.s32.totalorder %s34, 0
      %p355 = por %p353, %p354
      %s357 = sadd.s32 %s356, 1
      %p360 = scmp.eq.s32.totalorder %s28, 1
      %p361 = scmp.ne.s32.totalorder %s356, %s358
      %p362 = scmp.eq.s32.totalorder %s28, 0
      %p363 = por %p361, %p362
      %p364 = scmp.ne.s32.totalorder %s356, %s358
      %p365 = scmp.eq.s32.totalorder %s33, 1
      %p366 = por %p364, %p365
      %p367 = scmp.ne.s32.totalorder %s358, %s359
      %p368 = scmp.eq.s32.totalorder %s33, 0
      %p369 = por %p367, %p368
      %p370 = scmp.ne.s32.totalorder %s358, %s359
      %p371 = scmp.eq.s32.totalorder %s34, 1
      %p372 = por %p370, %p371
      %p374 = scmp.ne.s32.totalorder %s359, %s373
      %p375 = scmp.eq.s32.totalorder %s34, 0
      %p376 = por %p374, %p375
      %s378 = sadd.s32 %s377, 1
      %p381 = scmp.eq.s32.totalorder %s28, 1
      %p382 = scmp.ne.s32.totalorder %s377, %s379
      %p383 = scmp.eq.s32.totalorder %s28, 0
      %p384 = por %p382, %p383
      %p385 = scmp.ne.s32.totalorder %s377, %s379
      %p386 = scmp.eq.s32.totalorder %s33, 1
      %p387 = por %p385, %p386
      %p388 = scmp.ne.s32.totalorder %s379, %s380
      %p389 = scmp.eq.s32.totalorder %s33, 0
      %p390 = por %p388, %p389
      %p391 = scmp.ne.s32.totalorder %s379, %s380
      %p392 = scmp.eq.s32.totalorder %s34, 1
      %p393 = por %p391, %p392
      %p395 = scmp.ne.s32.totalorder %s380, %s394
      %p396 = scmp.eq.s32.totalorder %s34, 0
      %p397 = por %p395, %p396
      %s398 = ssub.s32 %s28, %s35
      %p399 = scmp.eq.s32.totalorder %s398, 0
      %s401 = sadd.s32 %s400, 1
      %s402 = scalar_select %p399, %s400, %s401
      %p405 = pneg %p399
      %p406 = scmp.eq.s32.totalorder %s28, 1
      %p407 = por %p405, %p406
      %p408 = scmp.ne.s32.totalorder %s400, %s403
      %p409 = scmp.eq.s32.totalorder %s28, 0
      %p410 = por %p408, %p409
      %p411 = scmp.ne.s32.totalorder %s400, %s403
      %p412 = scmp.eq.s32.totalorder %s33, 1
      %p413 = por %p411, %p412
      %p414 = scmp.ne.s32.totalorder %s403, %s404
      %p415 = scmp.eq.s32.totalorder %s33, 0
      %p416 = por %p414, %p415
      %p417 = scmp.ne.s32.totalorder %s403, %s404
      %p418 = scmp.eq.s32.totalorder %s34, 1
      %p419 = por %p417, %p418
      %p421 = scmp.ne.s32.totalorder %s404, %s420
      %p422 = scmp.eq.s32.totalorder %s34, 0
      %p423 = por %p421, %p422
      %p424 = scmp.le.s32.totalorder 1, %s28
      %p425 = scmp.lt.s32.totalorder %s28, 3
      %p426 = pnand %p424, %p425
      %p427 = pneg %p426
      // Predicated region
      $region9: #{tpu_custom_call.1} parent=5 // pred_check
        _
      $region10: #{tpu_custom_call.1} parent=5 // pred_check_branch
        %429 = sbr.rel (%p426) target = $region12
      $region11: #{tpu_custom_call.1} parent=5 // pred_region
        %s430 = ssub.s32 %s28, 1
        // Predicated region
        $region13: #{tpu_custom_call.1} parent=11 // pred_check
          %p431 = pneg %p75
        $region14: #{tpu_custom_call.1} parent=11 // pred_check_branch
          %433 = sbr.rel (%p431) target = $region16
        $region15: #{tpu_custom_call.1} parent=11 // pred_region
          _
        $region16: #{tpu_custom_call.1} parent=11 // pred_fallthru
          _
        // Predicated region
        $region17: #{tpu_custom_call.1} parent=11 // pred_check
          %p434 = pneg %p96
        $region18: #{tpu_custom_call.1} parent=11 // pred_check_branch
          %436 = sbr.rel (%p434) target = $region20
        $region19: #{tpu_custom_call.1} parent=11 // pred_region
          _
        $region20: #{tpu_custom_call.1} parent=11 // pred_fallthru
          _
        // Predicated region
        $region21: #{tpu_custom_call.1} parent=11 // pred_check
          %p437 = pneg %p117
        $region22: #{tpu_custom_call.1} parent=11 // pred_check_branch
          %439 = sbr.rel (%p437) target = $region24
        $region23: #{tpu_custom_call.1} parent=11 // pred_region
          _
        $region24: #{tpu_custom_call.1} parent=11 // pred_fallthru
          _
        // Predicated region
        $region25: #{tpu_custom_call.1} parent=11 // pred_check
          %p440 = pneg %p138
        $region26: #{tpu_custom_call.1} parent=11 // pred_check_branch
          %442 = sbr.rel (%p440) target = $region28
        $region27: #{tpu_custom_call.1} parent=11 // pred_region
          _
        $region28: #{tpu_custom_call.1} parent=11 // pred_fallthru
          _
        // Predicated region
        $region29: #{tpu_custom_call.1} parent=11 // pred_check
          %p443 = pneg %p159
        $region30: #{tpu_custom_call.1} parent=11 // pred_check_branch
          %445 = sbr.rel (%p443) target = $region32
        $region31: #{tpu_custom_call.1} parent=11 // pred_region
          _
        $region32: #{tpu_custom_call.1} parent=11 // pred_fallthru
          _
        // Predicated region
        $region33: #{tpu_custom_call.1} parent=11 // pred_check
          %p446 = pneg %p180
        $region34: #{tpu_custom_call.1} parent=11 // pred_check_branch
          %448 = sbr.rel (%p446) target = $region36
        $region35: #{tpu_custom_call.1} parent=11 // pred_region
          %s450 = ssub.s32 16, 16
          %451 = vsyncadd [#allocation3], %s450
          %s453 = sshll.u32 [#allocation2], 4
          %s454 = int_to_ptr.vmem [resolvable:$true] %s453
          %456 = dma.hbm_to_vmem [thread:$0]  %s6, 16, %s454, [#allocation3]
        $region36: #{tpu_custom_call.1} parent=11 // pred_fallthru
          _
        // Predicated region
        $region37: #{tpu_custom_call.1} parent=11 // pred_check
          %p457 = pneg %p201
        $region38: #{tpu_custom_call.1} parent=11 // pred_check_branch
          %459 = sbr.rel (%p457) target = $region40
        $region39: #{tpu_custom_call.1} parent=11 // pred_region
          _
        $region40: #{tpu_custom_call.1} parent=11 // pred_fallthru
          _
        // Predicated region
        $region41: #{tpu_custom_call.1} parent=11 // pred_check
          %p460 = pneg %p222
        $region42: #{tpu_custom_call.1} parent=11 // pred_check_branch
          %462 = sbr.rel (%p460) target = $region44
        $region43: #{tpu_custom_call.1} parent=11 // pred_region
          %s464 = ssub.s32 16, 16
          %465 = vsyncadd [#allocation6], %s464
          %s467 = sshll.u32 [#allocation5], 4
          %s468 = int_to_ptr.vmem [resolvable:$true] %s467
          %470 = dma.hbm_to_vmem [thread:$0]  %s8, 16, %s468, [#allocation6]
        $region44: #{tpu_custom_call.1} parent=11 // pred_fallthru
          _
        // Predicated region
        $region45: #{tpu_custom_call.1} parent=11 // pred_check
          %p471 = pneg %p243
        $region46: #{tpu_custom_call.1} parent=11 // pred_check_branch
          %473 = sbr.rel (%p471) target = $region48
        $region47: #{tpu_custom_call.1} parent=11 // pred_region
          %s475 = ssub.s32 16, 16
          %476 = vsyncadd [#allocation6], %s475
          %s478 = sshll.u32 [#allocation7], 4
          %s479 = int_to_ptr.vmem [resolvable:$true] %s478
          %481 = dma.hbm_to_vmem [thread:$0]  %s9, 16, %s479, [#allocation6]
        $region48: #{tpu_custom_call.1} parent=11 // pred_fallthru
          _
        // Predicated region
        $region49: #{tpu_custom_call.1} parent=11 // pred_check
          %p482 = pneg %p264
        $region50: #{tpu_custom_call.1} parent=11 // pred_check_branch
          %484 = sbr.rel (%p482) target = $region52
        $region51: #{tpu_custom_call.1} parent=11 // pred_region
          _
        $region52: #{tpu_custom_call.1} parent=11 // pred_fallthru
          _
        // Predicated region
        $region53: #{tpu_custom_call.1} parent=11 // pred_check
          %p485 = pneg %p285
        $region54: #{tpu_custom_call.1} parent=11 // pred_check_branch
          %487 = sbr.rel (%p485) target = $region56
        $region55: #{tpu_custom_call.1} parent=11 // pred_region
          _
        $region56: #{tpu_custom_call.1} parent=11 // pred_fallthru
          _
        // Predicated region
        $region57: #{tpu_custom_call.1} parent=11 // pred_check
          %p488 = pneg %p306
        $region58: #{tpu_custom_call.1} parent=11 // pred_check_branch
          %490 = sbr.rel (%p488) target = $region60
        $region59: #{tpu_custom_call.1} parent=11 // pred_region
          _
        $region60: #{tpu_custom_call.1} parent=11 // pred_fallthru
          _
        // Predicated region
        $region61: #{tpu_custom_call.1} parent=11 // pred_check
          %p491 = pneg %p327
        $region62: #{tpu_custom_call.1} parent=11 // pred_check_branch
          %493 = sbr.rel (%p491) target = $region64
        $region63: #{tpu_custom_call.1} parent=11 // pred_region
          _
        $region64: #{tpu_custom_call.1} parent=11 // pred_fallthru
          _
        // Predicated region
        $region65: #{tpu_custom_call.1} parent=11 // pred_check
          %p494 = pneg %p348
        $region66: #{tpu_custom_call.1} parent=11 // pred_check_branch
          %496 = sbr.rel (%p494) target = $region68
        $region67: #{tpu_custom_call.1} parent=11 // pred_region
          _
        $region68: #{tpu_custom_call.1} parent=11 // pred_fallthru
          _
        // Predicated region
        $region69: #{tpu_custom_call.1} parent=11 // pred_check
          %p497 = pneg %p369
        $region70: #{tpu_custom_call.1} parent=11 // pred_check_branch
          %499 = sbr.rel (%p497) target = $region72
        $region71: #{tpu_custom_call.1} parent=11 // pred_region
          _
        $region72: #{tpu_custom_call.1} parent=11 // pred_fallthru
          _
        // Predicated region
        $region73: #{tpu_custom_call.1} parent=11 // pred_check
          %p500 = pneg %p390
        $region74: #{tpu_custom_call.1} parent=11 // pred_check_branch
          %502 = sbr.rel (%p500) target = $region76
        $region75: #{tpu_custom_call.1} parent=11 // pred_region
          _
        $region76: #{tpu_custom_call.1} parent=11 // pred_fallthru
          _
      $region12: #{tpu_custom_call.1} parent=5 // pred_fallthru
        _
      %p503 = scmp.lt.s32.totalorder %s28, 2
      // Predicated region
      $region77: #{tpu_custom_call.1} parent=5 // pred_check
        %p504 = pneg %p503
      $region78: #{tpu_custom_call.1} parent=5 // pred_check_branch
        %506 = sbr.rel (%p504) target = $region80
      $region79: #{tpu_custom_call.1} parent=5 // pred_region
        // Predicated region
        $region81: #{tpu_custom_call.1} parent=79 // pred_check
          %p507 = pneg %p48
        $region82: #{tpu_custom_call.1} parent=79 // pred_check_branch
          %509 = sbr.rel (%p507) target = $region84
        $region83: #{tpu_custom_call.1} parent=79 // pred_region
          %p510 = scmp.lt.s32.totalorder %s28, 1
          %s511 = scalar_select %p510, %s28, 1
          %s512 = smul.addr %s511, 8
          %s513 = scalar_lea.vmem %s0, %s512
        $region84: #{tpu_custom_call.1} parent=79 // pred_fallthru
          _
      $region80: #{tpu_custom_call.1} parent=5 // pred_fallthru
        _
      %p514 = scmp.le.s32.totalorder 1, %s28
      %p515 = scmp.lt.s32.totalorder %s28, 3
      %p516 = pnand %p514, %p515
      %p517 = pneg %p516
      // Predicated region
      $region85: #{tpu_custom_call.1} parent=5 // pred_check
        _
      $region86: #{tpu_custom_call.1} parent=5 // pred_check_branch
        %519 = sbr.rel (%p516) target = $region88
      $region87: #{tpu_custom_call.1} parent=5 // pred_region
        %s520 = ssub.s32 %s28, 1
        // Predicated region
        $region89: #{tpu_custom_call.1} parent=87 // pred_check
          %p521 = pneg %p180
        $region90: #{tpu_custom_call.1} parent=87 // pred_check_branch
          %523 = sbr.rel (%p521) target = $region92
        $region91: #{tpu_custom_call.1} parent=87 // pred_region
          %524 = dma.done [#allocation3], 16
        $region92: #{tpu_custom_call.1} parent=87 // pred_fallthru
          _
        // Predicated region
        $region93: #{tpu_custom_call.1} parent=87 // pred_check
          %p525 = pneg %p222
        $region94: #{tpu_custom_call.1} parent=87 // pred_check_branch
          %527 = sbr.rel (%p525) target = $region96
        $region95: #{tpu_custom_call.1} parent=87 // pred_region
          %528 = dma.done [#allocation6], 16
        $region96: #{tpu_custom_call.1} parent=87 // pred_fallthru
          _
        // Predicated region
        $region97: #{tpu_custom_call.1} parent=87 // pred_check
          %p529 = pneg %p243
        $region98: #{tpu_custom_call.1} parent=87 // pred_check_branch
          %531 = sbr.rel (%p529) target = $region100
        $region99: #{tpu_custom_call.1} parent=87 // pred_region
          %532 = dma.done [#allocation6], 16
        $region100: #{tpu_custom_call.1} parent=87 // pred_fallthru
          _
        %p533 = scmp.lt.s32.totalorder %s33, 1
        %s534 = scalar_select %p533, %s33, 1
        %s535 = smul.addr %s534, 8
        %s536 = scalar_lea.vmem %s0, %s535
        %p537 = pneg %p54
        %p538 = pneg %p51
        %p539 = pneg %p75
        %p540 = pneg %p72
        %p541 = pneg %p96
        %p542 = pneg %p93
        %p543 = pneg %p117
        %p544 = pneg %p114
        %p545 = pneg %p138
        %p546 = pneg %p135
        %p547 = pneg %p159
        %p548 = pneg %p156
        %p549 = pneg %p180
        %p550 = pneg %p177
        %p551 = pneg %p201
        %p552 = pneg %p198
        %p553 = pneg %p222
        %p554 = pneg %p219
        %p555 = pneg %p243
        %p556 = pneg %p240
        %p557 = pneg %p264
        %p558 = pneg %p261
        %p559 = pneg %p285
        %p560 = pneg %p282
        %p561 = pneg %p306
        %p562 = pneg %p303
        %p563 = pneg %p327
        %p564 = pneg %p324
        %p565 = pneg %p348
        %p566 = pneg %p345
        %p567 = pneg %p369
        %p568 = pneg %p366
        %p569 = pneg %p390
        %p570 = pneg %p387
        %p571 = pneg %p416
        %p572 = pneg %p413
        %s573 = sand.u32 %s403, 1
        %s574 = scalar_lea.sflag [#allocation4], %s573
        %s575 = sand.u32 %s403, 1
        %s576 = smul.addr %s575, 8
        %s577 = scalar_lea.vmem [#allocation8], %s576
        %p578 = scmp.lt.s32.totalorder %s33, 1
        %s579 = scalar_select %p578, %s33, 1
        %s580 = smul.addr %s579, 8
        %s581 = scalar_lea.vmem %s0, %s580
        %v583 = vld [vmem:[%s581] sm:$0xff]
        %v584 = vld [vmem:[#allocation7] sm:$0x1]
        %v585 = vld [vmem:[%s10] sm:$0x1]
        %vm586 = vcmask 261120
        %v587 = vsel %vm586, %v583, 0.0
        %588 = vadd.xlane.f32.xlu0 %v587
        %v589 = vpop.xlane.xlu0 %588
        %v590 = vrcp.pop 32.0
        %v591 = vmul.f32 %v589, %v590
        %v592 = vsub.f32 %v583, %v591
        %v593 = vmul.f32 %v592, %v592
        %v594 = vsel %vm586, %v593, 0.0
        %595 = vadd.xlane.f32.xlu0 %v594
        %v596 = vpop.xlane.xlu0 %595
        %v597 = vmul.f32 %v596, %v590
        %v598 = vadd.f32 %v597, 1e-05
        %v599 = vrsqrt.pop %v598
        %v600 = vmul.f32 %v592, %v599
        %v602 = vlaneseq
        %v603 = vshrl.u32 %v602, 7
        %v604 = vsub.s32 0, %v603
        %v605 = vrot.slane %v584, %v604
        %v607 = vmul.f32 %v600, %v605
        %v609 = vlaneseq
        %v610 = vshrl.u32 %v609, 7
        %v611 = vsub.s32 0, %v610
        %v612 = vrot.slane %v585, %v611
        %v614 = vadd.f32 %v607, %v612
        %v615 = vpack.c.bf16 %v614, %v614
        %v616 = vld [vmem:[%s1] sm:$0xf]
        %v617 = vld [vmem:[%s1 + $0x4] sm:$0xf]
        %v618 = vld [vmem:[%s1 + $0x8] sm:$0xf]
        %v619 = vld [vmem:[%s1 + $0xc] sm:$0xf]
        %v620 = vld [vmem:[%s4] sm:$0x1]
        %v622 = vlaneseq
        %v623 = vshrl.u32 %v622, 7
        %v624 = vsub.s32 0, %v623
        %v625 = vrot.slane %v620, %v624
        %v631 = vunpack.c.l.b16 %v616
        %v632 = vunpack.c.l.b16 %v617
        %v633 = vunpack.c.l.b16 %v618
        %v634 = vunpack.c.l.b16 %v619
        %v635 = vpack.c.b16 %v632, %v631
        %v636 = vpack.c.b16 %v634, %v633
        %v640 = vsel %vm586, %v615, 0
        %642 = vmatprep.subr.bf16.mxu0 0
        %643 = vmatpush1.bf16.msra.mxu0 %v635
        %644 = vmatprep.subr.bf16.mxu0 0
        %645 = vmatpush1.bf16.msra.mxu0 %v636
        %646 = vmatprep.subr.bf16.mxu0 0
        %647 = vmatpush1.bf16.msra.mxu0 0
        %648 = vmatprep.subr.bf16.mxu0 0
        %649 = vmatpush1.bf16.msra.mxu0 0
        %650 = vmatprep.subr.bf16.mxu0 0
        %651 = vmatpush1.bf16.msra.mxu0 0
        %652 = vmatprep.subr.bf16.mxu0 0
        %653 = vmatpush1.bf16.msra.mxu0 0
        %654 = vmatprep.subr.bf16.mxu0 0
        %655 = vmatpush1.bf16.msra.mxu0 0
        %656 = vmatprep.subr.bf16.mxu0 0
        %657 = vmatpush1.bf16.msra.mxu0 0
        %658 = vmatprep.subr.bf16.mxu0 0
        %659 = vmatpush1.bf16.msra.mxu0 0
        %660 = vmatprep.subr.bf16.mxu0 0
        %661 = vmatpush1.bf16.msra.mxu0 0
        %662 = vmatprep.subr.bf16.mxu0 0
        %663 = vmatpush1.bf16.msra.mxu0 0
        %664 = vmatprep.subr.bf16.mxu0 0
        %665 = vmatpush1.bf16.msra.mxu0 0
        %666 = vmatprep.subr.bf16.mxu0 0
        %667 = vmatpush1.bf16.msra.mxu0 0
        %668 = vmatprep.subr.bf16.mxu0 0
        %669 = vmatpush1.bf16.msra.mxu0 0
        %670 = vmatprep.subr.bf16.mxu0 0
        %671 = vmatpush1.bf16.msra.mxu0 0
        %672 = vmatprep.subr.bf16.mxu0 0
        %673 = vmatpush1.bf16.msra.mxu0 0
        %674 = vmatprep.mubr.bf16.mxu0 0
        %675 = vmatmul.mubr.bf16.gmra.mrb[0].mxu0 %v640
        %v676 = vpop.f32.mrb[0].mxu0
        %v677 = vadd.f32 %v625, %v676
        %v678 = vpop.f32.mrb[0].mxu0
        %v679 = vpop.f32.mrb[0].mxu0
        %v680 = vpop.f32.mrb[0].mxu0
        %681 = vdwg.mxu0
        %v682 = vld [vmem:[%s2] sm:$0xf]
        %v683 = vld [vmem:[%s2 + $0x4] sm:$0xf]
        %v684 = vld [vmem:[%s2 + $0x8] sm:$0xf]
        %v685 = vld [vmem:[%s2 + $0xc] sm:$0xf]
        %v686 = vld [vmem:[%s5] sm:$0x1]
        %v688 = vlaneseq
        %v689 = vshrl.u32 %v688, 7
        %v690 = vsub.s32 0, %v689
        %v691 = vrot.slane %v686, %v690
        %v697 = vunpack.c.l.b16 %v682
        %v698 = vunpack.c.l.b16 %v683
        %v699 = vunpack.c.l.b16 %v684
        %v700 = vunpack.c.l.b16 %v685
        %v701 = vpack.c.b16 %v698, %v697
        %v702 = vpack.c.b16 %v700, %v699
        %705 = vmatprep.subr.bf16.mxu0 0
        %706 = vmatpush1.bf16.msra.mxu0 %v701
        %707 = vmatprep.subr.bf16.mxu0 0
        %708 = vmatpush1.bf16.msra.mxu0 %v702
        %709 = vmatprep.subr.bf16.mxu0 0
        %710 = vmatpush1.bf16.msra.mxu0 0
        %711 = vmatprep.subr.bf16.mxu0 0
        %712 = vmatpush1.bf16.msra.mxu0 0
        %713 = vmatprep.subr.bf16.mxu0 0
        %714 = vmatpush1.bf16.msra.mxu0 0
        %715 = vmatprep.subr.bf16.mxu0 0
        %716 = vmatpush1.bf16.msra.mxu0 0
        %717 = vmatprep.subr.bf16.mxu0 0
        %718 = vmatpush1.bf16.msra.mxu0 0
        %719 = vmatprep.subr.bf16.mxu0 0
        %720 = vmatpush1.bf16.msra.mxu0 0
        %721 = vmatprep.subr.bf16.mxu0 0
        %722 = vmatpush1.bf16.msra.mxu0 0
        %723 = vmatprep.subr.bf16.mxu0 0
        %724 = vmatpush1.bf16.msra.mxu0 0
        %725 = vmatprep.subr.bf16.mxu0 0
        %726 = vmatpush1.bf16.msra.mxu0 0
        %727 = vmatprep.subr.bf16.mxu0 0
        %728 = vmatpush1.bf16.msra.mxu0 0
        %729 = vmatprep.subr.bf16.mxu0 0
        %730 = vmatpush1.bf16.msra.mxu0 0
        %731 = vmatprep.subr.bf16.mxu0 0
        %732 = vmatpush1.bf16.msra.mxu0 0
        %733 = vmatprep.subr.bf16.mxu0 0
        %734 = vmatpush1.bf16.msra.mxu0 0
        %735 = vmatprep.subr.bf16.mxu0 0
        %736 = vmatpush1.bf16.msra.mxu0 0
        %737 = vmatprep.mubr.bf16.mxu0 0
        %738 = vmatmul.mubr.bf16.gmra.mrb[0].mxu0 %v640
        %v739 = vpop.f32.mrb[0].mxu0
        %v740 = vadd.f32 %v691, %v739
        %v741 = vpop.f32.mrb[0].mxu0
        %v742 = vpop.f32.mrb[0].mxu0
        %v743 = vpop.f32.mrb[0].mxu0
        %744 = vdwg.mxu0
        %v745 = vld [vmem:[%s3] sm:$0xf]
        %v746 = vld [vmem:[%s3 + $0x4] sm:$0xf]
        %v747 = vld [vmem:[%s3 + $0x8] sm:$0xf]
        %v748 = vld [vmem:[%s3 + $0xc] sm:$0xf]
        %v749 = vld [vmem:[#allocation2] sm:$0x1]
        %v751 = vlaneseq
        %v752 = vshrl.u32 %v751, 7
        %v753 = vsub.s32 0, %v752
        %v754 = vrot.slane %v749, %v753
        %v760 = vunpack.c.l.b16 %v745
        %v761 = vunpack.c.l.b16 %v746
        %v762 = vunpack.c.l.b16 %v747
        %v763 = vunpack.c.l.b16 %v748
        %v764 = vpack.c.b16 %v761, %v760
        %v765 = vpack.c.b16 %v763, %v762
        %768 = vmatprep.subr.bf16.mxu0 0
        %769 = vmatpush1.bf16.msra.mxu0 %v764
        %770 = vmatprep.subr.bf16.mxu0 0
        %771 = vmatpush1.bf16.msra.mxu0 %v765
        %772 = vmatprep.subr.bf16.mxu0 0
        %773 = vmatpush1.bf16.msra.mxu0 0
        %774 = vmatprep.subr.bf16.mxu0 0
        %775 = vmatpush1.bf16.msra.mxu0 0
        %776 = vmatprep.subr.bf16.mxu0 0
        %777 = vmatpush1.bf16.msra.mxu0 0
        %778 = vmatprep.subr.bf16.mxu0 0
        %779 = vmatpush1.bf16.msra.mxu0 0
        %780 = vmatprep.subr.bf16.mxu0 0
        %781 = vmatpush1.bf16.msra.mxu0 0
        %782 = vmatprep.subr.bf16.mxu0 0
        %783 = vmatpush1.bf16.msra.mxu0 0
        %784 = vmatprep.subr.bf16.mxu0 0
        %785 = vmatpush1.bf16.msra.mxu0 0
        %786 = vmatprep.subr.bf16.mxu0 0
        %787 = vmatpush1.bf16.msra.mxu0 0
        %788 = vmatprep.subr.bf16.mxu0 0
        %789 = vmatpush1.bf16.msra.mxu0 0
        %790 = vmatprep.subr.bf16.mxu0 0
        %791 = vmatpush1.bf16.msra.mxu0 0
        %792 = vmatprep.subr.bf16.mxu0 0
        %793 = vmatpush1.bf16.msra.mxu0 0
        %794 = vmatprep.subr.bf16.mxu0 0
        %795 = vmatpush1.bf16.msra.mxu0 0
        %796 = vmatprep.subr.bf16.mxu0 0
        %797 = vmatpush1.bf16.msra.mxu0 0
        %798 = vmatprep.subr.bf16.mxu0 0
        %799 = vmatpush1.bf16.msra.mxu0 0
        %800 = vmatprep.mubr.bf16.mxu0 0
        %801 = vmatmul.mubr.bf16.gmra.mrb[0].mxu0 %v640
        %v802 = vpop.f32.mrb[0].mxu0
        %v803 = vadd.f32 %v754, %v802
        %v804 = vpop.f32.mrb[0].mxu0
        %v805 = vpop.f32.mrb[0].mxu0
        %v806 = vpop.f32.mrb[0].mxu0
        %807 = vdwg.mxu0
        %v808 = vpack.c.bf16 %v677, %v677
        %v809 = vpack.c.bf16 %v740, %v740
        %v810 = vpack.c.bf16 %v803, %v803
        %vm811 = vcmask 64512
        %v813 = vsel %vm811, %v808, 0
        %v816 = vsel %vm811, %v809, 0
        %818 = vmatprep.subr.bf16.mxu0 0
        %819 = vmatpush1.bf16.xpose.msra.mxu0 %v816
        %820 = vmatprep.subr.bf16.mxu0 0
        %821 = vmatpush1.bf16.xpose.msra.mxu0 0
        %822 = vmatprep.subr.bf16.mxu0 0
        %823 = vmatpush1.bf16.xpose.msra.mxu0 0
        %824 = vmatprep.subr.bf16.mxu0 0
        %825 = vmatpush1.bf16.xpose.msra.mxu0 0
        %826 = vmatprep.subr.bf16.mxu0 0
        %827 = vmatpush1.bf16.xpose.msra.mxu0 0
        %828 = vmatprep.subr.bf16.mxu0 0
        %829 = vmatpush1.bf16.xpose.msra.mxu0 0
        %830 = vmatprep.subr.bf16.mxu0 0
        %831 = vmatpush1.bf16.xpose.msra.mxu0 0
        %832 = vmatprep.subr.bf16.mxu0 0
        %833 = vmatpush1.bf16.xpose.msra.mxu0 0
        %834 = vmatprep.subr.bf16.mxu0 0
        %835 = vmatpush1.bf16.xpose.msra.mxu0 0
        %836 = vmatprep.subr.bf16.mxu0 0
        %837 = vmatpush1.bf16.xpose.msra.mxu0 0
        %838 = vmatprep.subr.bf16.mxu0 0
        %839 = vmatpush1.bf16.xpose.msra.mxu0 0
        %840 = vmatprep.subr.bf16.mxu0 0
        %841 = vmatpush1.bf16.xpose.msra.mxu0 0
        %842 = vmatprep.subr.bf16.mxu0 0
        %843 = vmatpush1.bf16.xpose.msra.mxu0 0
        %844 = vmatprep.subr.bf16.mxu0 0
        %845 = vmatpush1.bf16.xpose.msra.mxu0 0
        %846 = vmatprep.subr.bf16.mxu0 0
        %847 = vmatpush1.bf16.xpose.msra.mxu0 0
        %848 = vmatprep.subr.bf16.mxu0 0
        %849 = vmatpush1.bf16.xpose.msra.mxu0 0
        %850 = vmatprep.mubr.bf16.mxu0 0
        %851 = vmatmul.mubr.bf16.gmra.mrb[0].mxu0 %v813
        %v852 = vpop.f32.mrb[0].mxu0
        %v853 = vadd.f32 0.0, %v852
        %v854 = vpop.f32.mrb[0].mxu0
        %v855 = vpop.f32.mrb[0].mxu0
        %v856 = vpop.f32.mrb[0].mxu0
        %857 = vdwg.mxu0
        %v858 = vsel %vm811, %v853, -inf
        %859 = vmax.xlane.f32.xlu0 %v858
        %v860 = vpop.xlane.xlu0 %859
        %v861 = vsub.f32 %v853, %v860
        %v862 = vmul.f32 %v861, 1.442695
        %v863 = vpow.pop %v862
        %v864 = vsel %vm811, %v863, 0.0
        %865 = vadd.xlane.f32.xlu0 %v864
        %v866 = vpop.xlane.xlu0 %865
        %v867 = vrcp.pop %v866
        %v868 = vmul.f32 %v863, %v867
        %v869 = vpack.c.bf16 %v868, %v868
        %v871 = vsel %vm811, %v869, 0
        %vm873 = vcmask 1043456
        %v875 = vsel %vm873, %v810, 0
        %877 = vmatprep.subr.bf16.mxu0 0
        %878 = vmatpush1.bf16.msra.mxu0 %v875
        %879 = vmatprep.subr.bf16.mxu0 0
        %880 = vmatpush1.bf16.msra.mxu0 0
        %881 = vmatprep.subr.bf16.mxu0 0
        %882 = vmatpush1.bf16.msra.mxu0 0
        %883 = vmatprep.subr.bf16.mxu0 0
        %884 = vmatpush1.bf16.msra.mxu0 0
        %885 = vmatprep.subr.bf16.mxu0 0
        %886 = vmatpush1.bf16.msra.mxu0 0
        %887 = vmatprep.subr.bf16.mxu0 0
        %888 = vmatpush1.bf16.msra.mxu0 0
        %889 = vmatprep.subr.bf16.mxu0 0
        %890 = vmatpush1.bf16.msra.mxu0 0
        %891 = vmatprep.subr.bf16.mxu0 0
        %892 = vmatpush1.bf16.msra.mxu0 0
        %893 = vmatprep.subr.bf16.mxu0 0
        %894 = vmatpush1.bf16.msra.mxu0 0
        %895 = vmatprep.subr.bf16.mxu0 0
        %896 = vmatpush1.bf16.msra.mxu0 0
        %897 = vmatprep.subr.bf16.mxu0 0
        %898 = vmatpush1.bf16.msra.mxu0 0
        %899 = vmatprep.subr.bf16.mxu0 0
        %900 = vmatpush1.bf16.msra.mxu0 0
        %901 = vmatprep.subr.bf16.mxu0 0
        %902 = vmatpush1.bf16.msra.mxu0 0
        %903 = vmatprep.subr.bf16.mxu0 0
        %904 = vmatpush1.bf16.msra.mxu0 0
        %905 = vmatprep.subr.bf16.mxu0 0
        %906 = vmatpush1.bf16.msra.mxu0 0
        %907 = vmatprep.subr.bf16.mxu0 0
        %908 = vmatpush1.bf16.msra.mxu0 0
        %909 = vmatprep.mubr.bf16.mxu0 0
        %910 = vmatmul.mubr.bf16.gmra.mrb[0].mxu0 %v871
        %v911 = vpop.f32.mrb[0].mxu0
        %v912 = vadd.f32 0.0, %v911
        %v913 = vpop.f32.mrb[0].mxu0
        %v914 = vpop.f32.mrb[0].mxu0
        %v915 = vpop.f32.mrb[0].mxu0
        %916 = vdwg.mxu0
        %v917 = vpack.c.bf16 %v912, %v912
        %v918 = vld [vmem:[%s7] sm:$0xf]
        %920 = vrot.lane.b32.xlu0 %v808, 120
        %v921 = vpop.permute.xlu0 %920
        %923 = vrot.lane.b32.xlu0 %v809, 120
        %v924 = vpop.permute.xlu0 %923
        %v926 = vsel %vm811, %v921, 0
        %v929 = vsel %vm811, %v924, 0
        %931 = vmatprep.subr.bf16.mxu0 0
        %932 = vmatpush1.bf16.xpose.msra.mxu0 %v929
        %933 = vmatprep.subr.bf16.mxu0 0
        %934 = vmatpush1.bf16.xpose.msra.mxu0 0
        %935 = vmatprep.subr.bf16.mxu0 0
        %936 = vmatpush1.bf16.xpose.msra.mxu0 0
        %937 = vmatprep.subr.bf16.mxu0 0
        %938 = vmatpush1.bf16.xpose.msra.mxu0 0
        %939 = vmatprep.subr.bf16.mxu0 0
        %940 = vmatpush1.bf16.xpose.msra.mxu0 0
        %941 = vmatprep.subr.bf16.mxu0 0
        %942 = vmatpush1.bf16.xpose.msra.mxu0 0
        %943 = vmatprep.subr.bf16.mxu0 0
        %944 = vmatpush1.bf16.xpose.msra.mxu0 0
        %945 = vmatprep.subr.bf16.mxu0 0
        %946 = vmatpush1.bf16.xpose.msra.mxu0 0
        %947 = vmatprep.subr.bf16.mxu0 0
        %948 = vmatpush1.bf16.xpose.msra.mxu0 0
        %949 = vmatprep.subr.bf16.mxu0 0
        %950 = vmatpush1.bf16.xpose.msra.mxu0 0
        %951 = vmatprep.subr.bf16.mxu0 0
        %952 = vmatpush1.bf16.xpose.msra.mxu0 0
        %953 = vmatprep.subr.bf16.mxu0 0
        %954 = vmatpush1.bf16.xpose.msra.mxu0 0
        %955 = vmatprep.subr.bf16.mxu0 0
        %956 = vmatpush1.bf16.xpose.msra.mxu0 0
        %957 = vmatprep.subr.bf16.mxu0 0
        %958 = vmatpush1.bf16.xpose.msra.mxu0 0
        %959 = vmatprep.subr.bf16.mxu0 0
        %960 = vmatpush1.bf16.xpose.msra.mxu0 0
        %961 = vmatprep.subr.bf16.mxu0 0
        %962 = vmatpush1.bf16.xpose.msra.mxu0 0
        %963 = vmatprep.mubr.bf16.mxu0 0
        %964 = vmatmul.mubr.bf16.gmra.mrb[0].mxu0 %v926
        %v965 = vpop.f32.mrb[0].mxu0
        %v966 = vadd.f32 0.0, %v965
        %v967 = vpop.f32.mrb[0].mxu0
        %v968 = vpop.f32.mrb[0].mxu0
        %v969 = vpop.f32.mrb[0].mxu0
        %970 = vdwg.mxu0
        %v971 = vsel %vm811, %v966, -inf
        %972 = vmax.xlane.f32.xlu0 %v971
        %v973 = vpop.xlane.xlu0 %972
        %v974 = vsub.f32 %v966, %v973
        %v975 = vmul.f32 %v974, 1.442695
        %v976 = vpow.pop %v975
        %v977 = vsel %vm811, %v976, 0.0
        %978 = vadd.xlane.f32.xlu0 %v977
        %v979 = vpop.xlane.xlu0 %978
        %v980 = vrcp.pop %v979
        %v981 = vmul.f32 %v976, %v980
        %v982 = vpack.c.bf16 %v981, %v981
        %984 = vrot.lane.b32.xlu0 %v810, 120
        %v985 = vpop.permute.xlu0 %984
        %v987 = vsel %vm811, %v982, 0
        %v990 = vsel %vm873, %v985, 0
        %992 = vmatprep.subr.bf16.mxu0 0
        %993 = vmatpush1.bf16.msra.mxu0 %v990
        %994 = vmatprep.subr.bf16.mxu0 0
        %995 = vmatpush1.bf16.msra.mxu0 0
        %996 = vmatprep.subr.bf16.mxu0 0
        %997 = vmatpush1.bf16.msra.mxu0 0
        %998 = vmatprep.subr.bf16.mxu0 0
        %999 = vmatpush1.bf16.msra.mxu0 0
        %1000 = vmatprep.subr.bf16.mxu0 0
        %1001 = vmatpush1.bf16.msra.mxu0 0
        %1002 = vmatprep.subr.bf16.mxu0 0
        %1003 = vmatpush1.bf16.msra.mxu0 0
        %1004 = vmatprep.subr.bf16.mxu0 0
        %1005 = vmatpush1.bf16.msra.mxu0 0
        %1006 = vmatprep.subr.bf16.mxu0 0
        %1007 = vmatpush1.bf16.msra.mxu0 0
        %1008 = vmatprep.subr.bf16.mxu0 0
        %1009 = vmatpush1.bf16.msra.mxu0 0
        %1010 = vmatprep.subr.bf16.mxu0 0
        %1011 = vmatpush1.bf16.msra.mxu0 0
        %1012 = vmatprep.subr.bf16.mxu0 0
        %1013 = vmatpush1.bf16.msra.mxu0 0
        %1014 = vmatprep.subr.bf16.mxu0 0
        %1015 = vmatpush1.bf16.msra.mxu0 0
        %1016 = vmatprep.subr.bf16.mxu0 0
        %1017 = vmatpush1.bf16.msra.mxu0 0
        %1018 = vmatprep.subr.bf16.mxu0 0
        %1019 = vmatpush1.bf16.msra.mxu0 0
        %1020 = vmatprep.subr.bf16.mxu0 0
        %1021 = vmatpush1.bf16.msra.mxu0 0
        %1022 = vmatprep.subr.bf16.mxu0 0
        %1023 = vmatpush1.bf16.msra.mxu0 0
        %1024 = vmatprep.mubr.bf16.mxu0 0
        %1025 = vmatmul.mubr.bf16.gmra.mrb[0].mxu0 %v987
        %v1026 = vpop.f32.mrb[0].mxu0
        %v1027 = vadd.f32 0.0, %v1026
        %v1028 = vpop.f32.mrb[0].mxu0
        %v1029 = vpop.f32.mrb[0].mxu0
        %v1030 = vpop.f32.mrb[0].mxu0
        %1031 = vdwg.mxu0
        %v1032 = vpack.c.bf16 %v1027, %v1027
        %v1033 = vld [vmem:[%s7 + $0x4] sm:$0xf]
        %v1035 = vsel %vm811, %v1032, 0
        %v1038 = vsel %vm873, %v1033, 0
        %1040 = vmatprep.subr.bf16.mxu0 0
        %1041 = vmatpush1.bf16.msra.mxu0 %v1038
        %1042 = vmatprep.subr.bf16.mxu0 0
        %1043 = vmatpush1.bf16.msra.mxu0 0
        %1044 = vmatprep.subr.bf16.mxu0 0
        %1045 = vmatpush1.bf16.msra.mxu0 0
        %1046 = vmatprep.subr.bf16.mxu0 0
        %1047 = vmatpush1.bf16.msra.mxu0 0
        %1048 = vmatprep.subr.bf16.mxu0 0
        %1049 = vmatpush1.bf16.msra.mxu0 0
        %1050 = vmatprep.subr.bf16.mxu0 0
        %1051 = vmatpush1.bf16.msra.mxu0 0
        %1052 = vmatprep.subr.bf16.mxu0 0
        %1053 = vmatpush1.bf16.msra.mxu0 0
        %1054 = vmatprep.subr.bf16.mxu0 0
        %1055 = vmatpush1.bf16.msra.mxu0 0
        %1056 = vmatprep.subr.bf16.mxu0 0
        %1057 = vmatpush1.bf16.msra.mxu0 0
        %1058 = vmatprep.subr.bf16.mxu0 0
        %1059 = vmatpush1.bf16.msra.mxu0 0
        %1060 = vmatprep.subr.bf16.mxu0 0
        %1061 = vmatpush1.bf16.msra.mxu0 0
        %1062 = vmatprep.subr.bf16.mxu0 0
        %1063 = vmatpush1.bf16.msra.mxu0 0
        %1064 = vmatprep.subr.bf16.mxu0 0
        %1065 = vmatpush1.bf16.msra.mxu0 0
        %1066 = vmatprep.subr.bf16.mxu0 0
        %1067 = vmatpush1.bf16.msra.mxu0 0
        %1068 = vmatprep.subr.bf16.mxu0 0
        %1069 = vmatpush1.bf16.msra.mxu0 0
        %1070 = vmatprep.subr.bf16.mxu0 0
        %1071 = vmatpush1.bf16.msra.mxu0 0
        %1072 = vmatprep.mubr.bf16.mxu0 0
        %1073 = vmatmul.mubr.bf16.gmra.mrb[0].mxu0 %v1035
        %v1074 = vpop.f32.mrb[0].mxu0
        %v1075 = vadd.f32 0.0, %v1074
        %v1076 = vpop.f32.mrb[0].mxu0
        %v1077 = vpop.f32.mrb[0].mxu0
        %v1078 = vpop.f32.mrb[0].mxu0
        %1079 = vdwg.mxu0
        %v1081 = vsel %vm811, %v917, 0
        %v1084 = vsel %vm873, %v918, 0
        %1086 = vmatprep.subr.bf16.mxu0 0
        %1087 = vmatpush1.bf16.msra.mxu0 %v1084
        %1088 = vmatprep.subr.bf16.mxu0 0
        %1089 = vmatpush1.bf16.msra.mxu0 0
        %1090 = vmatprep.subr.bf16.mxu0 0
        %1091 = vmatpush1.bf16.msra.mxu0 0
        %1092 = vmatprep.subr.bf16.mxu0 0
        %1093 = vmatpush1.bf16.msra.mxu0 0
        %1094 = vmatprep.subr.bf16.mxu0 0
        %1095 = vmatpush1.bf16.msra.mxu0 0
        %1096 = vmatprep.subr.bf16.mxu0 0
        %1097 = vmatpush1.bf16.msra.mxu0 0
        %1098 = vmatprep.subr.bf16.mxu0 0
        %1099 = vmatpush1.bf16.msra.mxu0 0
        %1100 = vmatprep.subr.bf16.mxu0 0
        %1101 = vmatpush1.bf16.msra.mxu0 0
        %1102 = vmatprep.subr.bf16.mxu0 0
        %1103 = vmatpush1.bf16.msra.mxu0 0
        %1104 = vmatprep.subr.bf16.mxu0 0
        %1105 = vmatpush1.bf16.msra.mxu0 0
        %1106 = vmatprep.subr.bf16.mxu0 0
        %1107 = vmatpush1.bf16.msra.mxu0 0
        %1108 = vmatprep.subr.bf16.mxu0 0
        %1109 = vmatpush1.bf16.msra.mxu0 0
        %1110 = vmatprep.subr.bf16.mxu0 0
        %1111 = vmatpush1.bf16.msra.mxu0 0
        %1112 = vmatprep.subr.bf16.mxu0 0
        %1113 = vmatpush1.bf16.msra.mxu0 0
        %1114 = vmatprep.subr.bf16.mxu0 0
        %1115 = vmatpush1.bf16.msra.mxu0 0
        %1116 = vmatprep.subr.bf16.mxu0 0
        %1117 = vmatpush1.bf16.msra.mxu0 0
        %1118 = vmatprep.mubr.bf16.mxu0 0
        %1119 = vmatmul.mubr.bf16.gmra.mrb[0].mxu0 %v1081
        %v1120 = vpop.f32.mrb[0].mxu0
        %v1121 = vadd.f32 %v1075, %v1120
        %v1122 = vpop.f32.mrb[0].mxu0
        %v1123 = vpop.f32.mrb[0].mxu0
        %v1124 = vpop.f32.mrb[0].mxu0
        %1125 = vdwg.mxu0
        %1126 = vrot.lane.b32.xlu0 %v808, 112
        %v1127 = vpop.permute.xlu0 %1126
        %1128 = vrot.lane.b32.xlu0 %v809, 112
        %v1129 = vpop.permute.xlu0 %1128
        %v1131 = vsel %vm811, %v1127, 0
        %v1134 = vsel %vm811, %v1129, 0
        %1136 = vmatprep.subr.bf16.mxu0 0
        %1137 = vmatpush1.bf16.xpose.msra.mxu0 %v1134
        %1138 = vmatprep.subr.bf16.mxu0 0
        %1139 = vmatpush1.bf16.xpose.msra.mxu0 0
        %1140 = vmatprep.subr.bf16.mxu0 0
        %1141 = vmatpush1.bf16.xpose.msra.mxu0 0
        %1142 = vmatprep.subr.bf16.mxu0 0
        %1143 = vmatpush1.bf16.xpose.msra.mxu0 0
        %1144 = vmatprep.subr.bf16.mxu0 0
        %1145 = vmatpush1.bf16.xpose.msra.mxu0 0
        %1146 = vmatprep.subr.bf16.mxu0 0
        %1147 = vmatpush1.bf16.xpose.msra.mxu0 0
        %1148 = vmatprep.subr.bf16.mxu0 0
        %1149 = vmatpush1.bf16.xpose.msra.mxu0 0
        %1150 = vmatprep.subr.bf16.mxu0 0
        %1151 = vmatpush1.bf16.xpose.msra.mxu0 0
        %1152 = vmatprep.subr.bf16.mxu0 0
        %1153 = vmatpush1.bf16.xpose.msra.mxu0 0
        %1154 = vmatprep.subr.bf16.mxu0 0
        %1155 = vmatpush1.bf16.xpose.msra.mxu0 0
        %1156 = vmatprep.subr.bf16.mxu0 0
        %1157 = vmatpush1.bf16.xpose.msra.mxu0 0
        %1158 = vmatprep.subr.bf16.mxu0 0
        %1159 = vmatpush1.bf16.xpose.msra.mxu0 0
        %1160 = vmatprep.subr.bf16.mxu0 0
        %1161 = vmatpush1.bf16.xpose.msra.mxu0 0
        %1162 = vmatprep.subr.bf16.mxu0 0
        %1163 = vmatpush1.bf16.xpose.msra.mxu0 0
        %1164 = vmatprep.subr.bf16.mxu0 0
        %1165 = vmatpush1.bf16.xpose.msra.mxu0 0
        %1166 = vmatprep.subr.bf16.mxu0 0
        %1167 = vmatpush1.bf16.xpose.msra.mxu0 0
        %1168 = vmatprep.mubr.bf16.mxu0 0
        %1169 = vmatmul.mubr.bf16.gmra.mrb[0].mxu0 %v1131
        %v1170 = vpop.f32.mrb[0].mxu0
        %v1171 = vadd.f32 0.0, %v1170
        %v1172 = vpop.f32.mrb[0].mxu0
        %v1173 = vpop.f32.mrb[0].mxu0
        %v1174 = vpop.f32.mrb[0].mxu0
        %1175 = vdwg.mxu0
        %v1176 = vsel %vm811, %v1171, -inf
        %1177 = vmax.xlane.f32.xlu0 %v1176
        %v1178 = vpop.xlane.xlu0 %1177
        %v1179 = vsub.f32 %v1171, %v1178
        %v1180 = vmul.f32 %v1179, 1.442695
        %v1181 = vpow.pop %v1180
        %v1182 = vsel %vm811, %v1181, 0.0
        %1183 = vadd.xlane.f32.xlu0 %v1182
        %v1184 = vpop.xlane.xlu0 %1183
        %v1185 = vrcp.pop %v1184
        %v1186 = vmul.f32 %v1181, %v1185
        %v1187 = vpack.c.bf16 %v1186, %v1186
        %1188 = vrot.lane.b32.xlu0 %v810, 112
        %v1189 = vpop.permute.xlu0 %1188
        %v1191 = vsel %vm811, %v1187, 0
        %v1194 = vsel %vm873, %v1189, 0
        %1196 = vmatprep.subr.bf16.mxu0 0
        %1197 = vmatpush1.bf16.msra.mxu0 %v1194
        %1198 = vmatprep.subr.bf16.mxu0 0
        %1199 = vmatpush1.bf16.msra.mxu0 0
        %1200 = vmatprep.subr.bf16.mxu0 0
        %1201 = vmatpush1.bf16.msra.mxu0 0
        %1202 = vmatprep.subr.bf16.mxu0 0
        %1203 = vmatpush1.bf16.msra.mxu0 0
        %1204 = vmatprep.subr.bf16.mxu0 0
        %1205 = vmatpush1.bf16.msra.mxu0 0
        %1206 = vmatprep.subr.bf16.mxu0 0
        %1207 = vmatpush1.bf16.msra.mxu0 0
        %1208 = vmatprep.subr.bf16.mxu0 0
        %1209 = vmatpush1.bf16.msra.mxu0 0
        %1210 = vmatprep.subr.bf16.mxu0 0
        %1211 = vmatpush1.bf16.msra.mxu0 0
        %1212 = vmatprep.subr.bf16.mxu0 0
        %1213 = vmatpush1.bf16.msra.mxu0 0
        %1214 = vmatprep.subr.bf16.mxu0 0
        %1215 = vmatpush1.bf16.msra.mxu0 0
        %1216 = vmatprep.subr.bf16.mxu0 0
        %1217 = vmatpush1.bf16.msra.mxu0 0
        %1218 = vmatprep.subr.bf16.mxu0 0
        %1219 = vmatpush1.bf16.msra.mxu0 0
        %1220 = vmatprep.subr.bf16.mxu0 0
        %1221 = vmatpush1.bf16.msra.mxu0 0
        %1222 = vmatprep.subr.bf16.mxu0 0
        %1223 = vmatpush1.bf16.msra.mxu0 0
        %1224 = vmatprep.subr.bf16.mxu0 0
        %1225 = vmatpush1.bf16.msra.mxu0 0
        %1226 = vmatprep.subr.bf16.mxu0 0
        %1227 = vmatpush1.bf16.msra.mxu0 0
        %1228 = vmatprep.mubr.bf16.mxu0 0
        %1229 = vmatmul.mubr.bf16.gmra.mrb[0].mxu0 %v1191
        %v1230 = vpop.f32.mrb[0].mxu0
        %v1231 = vadd.f32 0.0, %v1230
        %v1232 = vpop.f32.mrb[0].mxu0
        %v1233 = vpop.f32.mrb[0].mxu0
        %v1234 = vpop.f32.mrb[0].mxu0
        %1235 = vdwg.mxu0
        %v1236 = vpack.c.bf16 %v1231, %v1231
        %v1237 = vld [vmem:[%s7 + $0x8] sm:$0xf]
        %v1239 = vsel %vm811, %v1236, 0
        %v1242 = vsel %vm873, %v1237, 0
        %1244 = vmatprep.subr.bf16.mxu0 0
        %1245 = vmatpush1.bf16.msra.mxu0 %v1242
        %1246 = vmatprep.subr.bf16.mxu0 0
        %1247 = vmatpush1.bf16.msra.mxu0 0
        %1248 = vmatprep.subr.bf16.mxu0 0
        %1249 = vmatpush1.bf16.msra.mxu0 0
        %1250 = vmatprep.subr.bf16.mxu0 0
        %1251 = vmatpush1.bf16.msra.mxu0 0
        %1252 = vmatprep.subr.bf16.mxu0 0
        %1253 = vmatpush1.bf16.msra.mxu0 0
        %1254 = vmatprep.subr.bf16.mxu0 0
        %1255 = vmatpush1.bf16.msra.mxu0 0
        %1256 = vmatprep.subr.bf16.mxu0 0
        %1257 = vmatpush1.bf16.msra.mxu0 0
        %1258 = vmatprep.subr.bf16.mxu0 0
        %1259 = vmatpush1.bf16.msra.mxu0 0
        %1260 = vmatprep.subr.bf16.mxu0 0
        %1261 = vmatpush1.bf16.msra.mxu0 0
        %1262 = vmatprep.subr.bf16.mxu0 0
        %1263 = vmatpush1.bf16.msra.mxu0 0
        %1264 = vmatprep.subr.bf16.mxu0 0
        %1265 = vmatpush1.bf16.msra.mxu0 0
        %1266 = vmatprep.subr.bf16.mxu0 0
        %1267 = vmatpush1.bf16.msra.mxu0 0
        %1268 = vmatprep.subr.bf16.mxu0 0
        %1269 = vmatpush1.bf16.msra.mxu0 0
        %1270 = vmatprep.subr.bf16.mxu0 0
        %1271 = vmatpush1.bf16.msra.mxu0 0
        %1272 = vmatprep.subr.bf16.mxu0 0
        %1273 = vmatpush1.bf16.msra.mxu0 0
        %1274 = vmatprep.subr.bf16.mxu0 0
        %1275 = vmatpush1.bf16.msra.mxu0 0
        %1276 = vmatprep.mubr.bf16.mxu0 0
        %1277 = vmatmul.mubr.bf16.gmra.mrb[0].mxu0 %v1239
        %v1278 = vpop.f32.mrb[0].mxu0
        %v1279 = vadd.f32 0.0, %v1278
        %v1280 = vpop.f32.mrb[0].mxu0
        %v1281 = vpop.f32.mrb[0].mxu0
        %v1282 = vpop.f32.mrb[0].mxu0
        %1283 = vdwg.mxu0
        %v1284 = vadd.f32 %v1121, %v1279
        %1285 = vrot.lane.b32.xlu0 %v808, 104
        %v1286 = vpop.permute.xlu0 %1285
        %1287 = vrot.lane.b32.xlu0 %v809, 104
        %v1288 = vpop.permute.xlu0 %1287
        %v1290 = vsel %vm811, %v1286, 0
        %v1293 = vsel %vm811, %v1288, 0
        %1295 = vmatprep.subr.bf16.mxu0 0
        %1296 = vmatpush1.bf16.xpose.msra.mxu0 %v1293
        %1297 = vmatprep.subr.bf16.mxu0 0
        %1298 = vmatpush1.bf16.xpose.msra.mxu0 0
        %1299 = vmatprep.subr.bf16.mxu0 0
        %1300 = vmatpush1.bf16.xpose.msra.mxu0 0
        %1301 = vmatprep.subr.bf16.mxu0 0
        %1302 = vmatpush1.bf16.xpose.msra.mxu0 0
        %1303 = vmatprep.subr.bf16.mxu0 0
        %1304 = vmatpush1.bf16.xpose.msra.mxu0 0
        %1305 = vmatprep.subr.bf16.mxu0 0
        %1306 = vmatpush1.bf16.xpose.msra.mxu0 0
        %1307 = vmatprep.subr.bf16.mxu0 0
        %1308 = vmatpush1.bf16.xpose.msra.mxu0 0
        %1309 = vmatprep.subr.bf16.mxu0 0
        %1310 = vmatpush1.bf16.xpose.msra.mxu0 0
        %1311 = vmatprep.subr.bf16.mxu0 0
        %1312 = vmatpush1.bf16.xpose.msra.mxu0 0
        %1313 = vmatprep.subr.bf16.mxu0 0
        %1314 = vmatpush1.bf16.xpose.msra.mxu0 0
        %1315 = vmatprep.subr.bf16.mxu0 0
        %1316 = vmatpush1.bf16.xpose.msra.mxu0 0
        %1317 = vmatprep.subr.bf16.mxu0 0
        %1318 = vmatpush1.bf16.xpose.msra.mxu0 0
        %1319 = vmatprep.subr.bf16.mxu0 0
        %1320 = vmatpush1.bf16.xpose.msra.mxu0 0
        %1321 = vmatprep.subr.bf16.mxu0 0
        %1322 = vmatpush1.bf16.xpose.msra.mxu0 0
        %1323 = vmatprep.subr.bf16.mxu0 0
        %1324 = vmatpush1.bf16.xpose.msra.mxu0 0
        %1325 = vmatprep.subr.bf16.mxu0 0
        %1326 = vmatpush1.bf16.xpose.msra.mxu0 0
        %1327 = vmatprep.mubr.bf16.mxu0 0
        %1328 = vmatmul.mubr.bf16.gmra.mrb[0].mxu0 %v1290
        %v1329 = vpop.f32.mrb[0].mxu0
        %v1330 = vadd.f32 0.0, %v1329
        %v1331 = vpop.f32.mrb[0].mxu0
        %v1332 = vpop.f32.mrb[0].mxu0
        %v1333 = vpop.f32.mrb[0].mxu0
        %1334 = vdwg.mxu0
        %v1335 = vsel %vm811, %v1330, -inf
        %1336 = vmax.xlane.f32.xlu0 %v1335
        %v1337 = vpop.xlane.xlu0 %1336
        %v1338 = vsub.f32 %v1330, %v1337
        %v1339 = vmul.f32 %v1338, 1.442695
        %v1340 = vpow.pop %v1339
        %v1341 = vsel %vm811, %v1340, 0.0
        %1342 = vadd.xlane.f32.xlu0 %v1341
        %v1343 = vpop.xlane.xlu0 %1342
        %v1344 = vrcp.pop %v1343
        %v1345 = vmul.f32 %v1340, %v1344
        %v1346 = vpack.c.bf16 %v1345, %v1345
        %1347 = vrot.lane.b32.xlu0 %v810, 104
        %v1348 = vpop.permute.xlu0 %1347
        %v1350 = vsel %vm811, %v1346, 0
        %v1353 = vsel %vm873, %v1348, 0
        %1355 = vmatprep.subr.bf16.mxu0 0
        %1356 = vmatpush1.bf16.msra.mxu0 %v1353
        %1357 = vmatprep.subr.bf16.mxu0 0
        %1358 = vmatpush1.bf16.msra.mxu0 0
        %1359 = vmatprep.subr.bf16.mxu0 0
        %1360 = vmatpush1.bf16.msra.mxu0 0
        %1361 = vmatprep.subr.bf16.mxu0 0
        %1362 = vmatpush1.bf16.msra.mxu0 0
        %1363 = vmatprep.subr.bf16.mxu0 0
        %1364 = vmatpush1.bf16.msra.mxu0 0
        %1365 = vmatprep.subr.bf16.mxu0 0
        %1366 = vmatpush1.bf16.msra.mxu0 0
        %1367 = vmatprep.subr.bf16.mxu0 0
        %1368 = vmatpush1.bf16.msra.mxu0 0
        %1369 = vmatprep.subr.bf16.mxu0 0
        %1370 = vmatpush1.bf16.msra.mxu0 0
        %1371 = vmatprep.subr.bf16.mxu0 0
        %1372 = vmatpush1.bf16.msra.mxu0 0
        %1373 = vmatprep.subr.bf16.mxu0 0
        %1374 = vmatpush1.bf16.msra.mxu0 0
        %1375 = vmatprep.subr.bf16.mxu0 0
        %1376 = vmatpush1.bf16.msra.mxu0 0
        %1377 = vmatprep.subr.bf16.mxu0 0
        %1378 = vmatpush1.bf16.msra.mxu0 0
        %1379 = vmatprep.subr.bf16.mxu0 0
        %1380 = vmatpush1.bf16.msra.mxu0 0
        %1381 = vmatprep.subr.bf16.mxu0 0
        %1382 = vmatpush1.bf16.msra.mxu0 0
        %1383 = vmatprep.subr.bf16.mxu0 0
        %1384 = vmatpush1.bf16.msra.mxu0 0
        %1385 = vmatprep.subr.bf16.mxu0 0
        %1386 = vmatpush1.bf16.msra.mxu0 0
        %1387 = vmatprep.mubr.bf16.mxu0 0
        %1388 = vmatmul.mubr.bf16.gmra.mrb[0].mxu0 %v1350
        %v1389 = vpop.f32.mrb[0].mxu0
        %v1390 = vadd.f32 0.0, %v1389
        %v1391 = vpop.f32.mrb[0].mxu0
        %v1392 = vpop.f32.mrb[0].mxu0
        %v1393 = vpop.f32.mrb[0].mxu0
        %1394 = vdwg.mxu0
        %v1395 = vpack.c.bf16 %v1390, %v1390
        %v1396 = vld [vmem:[%s7 + $0xc] sm:$0xf]
        %v1398 = vsel %vm811, %v1395, 0
        %v1401 = vsel %vm873, %v1396, 0
        %1403 = vmatprep.subr.bf16.mxu0 0
        %1404 = vmatpush1.bf16.msra.mxu0 %v1401
        %1405 = vmatprep.subr.bf16.mxu0 0
        %1406 = vmatpush1.bf16.msra.mxu0 0
        %1407 = vmatprep.subr.bf16.mxu0 0
        %1408 = vmatpush1.bf16.msra.mxu0 0
        %1409 = vmatprep.subr.bf16.mxu0 0
        %1410 = vmatpush1.bf16.msra.mxu0 0
        %1411 = vmatprep.subr.bf16.mxu0 0
        %1412 = vmatpush1.bf16.msra.mxu0 0
        %1413 = vmatprep.subr.bf16.mxu0 0
        %1414 = vmatpush1.bf16.msra.mxu0 0
        %1415 = vmatprep.subr.bf16.mxu0 0
        %1416 = vmatpush1.bf16.msra.mxu0 0
        %1417 = vmatprep.subr.bf16.mxu0 0
        %1418 = vmatpush1.bf16.msra.mxu0 0
        %1419 = vmatprep.subr.bf16.mxu0 0
        %1420 = vmatpush1.bf16.msra.mxu0 0
        %1421 = vmatprep.subr.bf16.mxu0 0
        %1422 = vmatpush1.bf16.msra.mxu0 0
        %1423 = vmatprep.subr.bf16.mxu0 0
        %1424 = vmatpush1.bf16.msra.mxu0 0
        %1425 = vmatprep.subr.bf16.mxu0 0
        %1426 = vmatpush1.bf16.msra.mxu0 0
        %1427 = vmatprep.subr.bf16.mxu0 0
        %1428 = vmatpush1.bf16.msra.mxu0 0
        %1429 = vmatprep.subr.bf16.mxu0 0
        %1430 = vmatpush1.bf16.msra.mxu0 0
        %1431 = vmatprep.subr.bf16.mxu0 0
        %1432 = vmatpush1.bf16.msra.mxu0 0
        %1433 = vmatprep.subr.bf16.mxu0 0
        %1434 = vmatpush1.bf16.msra.mxu0 0
        %1435 = vmatprep.mubr.bf16.mxu0 0
        %1436 = vmatmul.mubr.bf16.gmra.mrb[0].mxu0 %v1398
        %v1437 = vpop.f32.mrb[0].mxu0
        %v1438 = vadd.f32 0.0, %v1437
        %v1439 = vpop.f32.mrb[0].mxu0
        %v1440 = vpop.f32.mrb[0].mxu0
        %v1441 = vpop.f32.mrb[0].mxu0
        %1442 = vdwg.mxu0
        %v1443 = vadd.f32 %v1284, %v1438
        %v1444 = vadd.f32 %v583, %v1443
        %v1445 = vld [vmem:[#allocation5] sm:$0x1]
        %v1447 = vlaneseq
        %v1448 = vshrl.u32 %v1447, 7
        %v1449 = vsub.s32 0, %v1448
        %v1450 = vrot.slane %v1445, %v1449
        %v1452 = vadd.f32 %v1444, %v1450
        %v1453 = vld [vmem:[%s11] sm:$0x1]
        %v1454 = vld [vmem:[%s12] sm:$0x1]
        %v1455 = vsel %vm586, %v1452, 0.0
        %1456 = vadd.xlane.f32.xlu0 %v1455
        %v1457 = vpop.xlane.xlu0 %1456
        %v1458 = vmul.f32 %v1457, %v590
        %v1459 = vsub.f32 %v1452, %v1458
        %v1460 = vmul.f32 %v1459, %v1459
        %v1461 = vsel %vm586, %v1460, 0.0
        %1462 = vadd.xlane.f32.xlu0 %v1461
        %v1463 = vpop.xlane.xlu0 %1462
        %v1464 = vmul.f32 %v1463, %v590
        %v1465 = vadd.f32 %v1464, 1e-05
        %v1466 = vrsqrt.pop %v1465
        %v1467 = vmul.f32 %v1459, %v1466
        %v1469 = vlaneseq
        %v1470 = vshrl.u32 %v1469, 7
        %v1471 = vsub.s32 0, %v1470
        %v1472 = vrot.slane %v1453, %v1471
        %v1474 = vmul.f32 %v1467, %v1472
        %v1476 = vlaneseq
        %v1477 = vshrl.u32 %v1476, 7
        %v1478 = vsub.s32 0, %v1477
        %v1479 = vrot.slane %v1454, %v1478
        %v1481 = vadd.f32 %v1474, %v1479
        %v1482 = vpack.c.bf16 %v1481, %v1481
        %v1483 = vld [vmem:[%s13] sm:$0xf]
        %v1484 = vld [vmem:[%s13 + $0x4] sm:$0xf]
        %v1485 = vld [vmem:[%s13 + $0x8] sm:$0xf]
        %v1486 = vld [vmem:[%s13 + $0xc] sm:$0xf]
        %v1487 = vld [vmem:[%s14] sm:$0x1]
        %v1489 = vlaneseq
        %v1490 = vshrl.u32 %v1489, 7
        %v1491 = vsub.s32 0, %v1490
        %v1492 = vrot.slane %v1487, %v1491
        %v1498 = vunpack.c.l.b16 %v1483
        %v1499 = vunpack.c.l.b16 %v1484
        %v1500 = vunpack.c.l.b16 %v1485
        %v1501 = vunpack.c.l.b16 %v1486
        %v1502 = vpack.c.b16 %v1499, %v1498
        %v1503 = vpack.c.b16 %v1501, %v1500
        %v1507 = vsel %vm586, %v1482, 0
        %1509 = vmatprep.subr.bf16.mxu0 0
        %1510 = vmatpush1.bf16.msra.mxu0 %v1502
        %1511 = vmatprep.subr.bf16.mxu0 0
        %1512 = vmatpush1.bf16.msra.mxu0 %v1503
        %1513 = vmatprep.subr.bf16.mxu0 0
        %1514 = vmatpush1.bf16.msra.mxu0 0
        %1515 = vmatprep.subr.bf16.mxu0 0
        %1516 = vmatpush1.bf16.msra.mxu0 0
        %1517 = vmatprep.subr.bf16.mxu0 0
        %1518 = vmatpush1.bf16.msra.mxu0 0
        %1519 = vmatprep.subr.bf16.mxu0 0
        %1520 = vmatpush1.bf16.msra.mxu0 0
        %1521 = vmatprep.subr.bf16.mxu0 0
        %1522 = vmatpush1.bf16.msra.mxu0 0
        %1523 = vmatprep.subr.bf16.mxu0 0
        %1524 = vmatpush1.bf16.msra.mxu0 0
        %1525 = vmatprep.subr.bf16.mxu0 0
        %1526 = vmatpush1.bf16.msra.mxu0 0
        %1527 = vmatprep.subr.bf16.mxu0 0
        %1528 = vmatpush1.bf16.msra.mxu0 0
        %1529 = vmatprep.subr.bf16.mxu0 0
        %1530 = vmatpush1.bf16.msra.mxu0 0
        %1531 = vmatprep.subr.bf16.mxu0 0
        %1532 = vmatpush1.bf16.msra.mxu0 0
        %1533 = vmatprep.subr.bf16.mxu0 0
        %1534 = vmatpush1.bf16.msra.mxu0 0
        %1535 = vmatprep.subr.bf16.mxu0 0
        %1536 = vmatpush1.bf16.msra.mxu0 0
        %1537 = vmatprep.subr.bf16.mxu0 0
        %1538 = vmatpush1.bf16.msra.mxu0 0
        %1539 = vmatprep.subr.bf16.mxu0 0
        %1540 = vmatpush1.bf16.msra.mxu0 0
        %1541 = vmatprep.mubr.bf16.mxu0 0
        %1542 = vmatmul.mubr.bf16.gmra.mrb[0].mxu0 %v1507
        %v1543 = vpop.f32.mrb[0].mxu0
        %v1544 = vadd.f32 %v1492, %v1543
        %v1545 = vpop.f32.mrb[0].mxu0
        %v1546 = vpop.f32.mrb[0].mxu0
        %v1547 = vpop.f32.mrb[0].mxu0
        %1548 = vdwg.mxu0
        %v1549 = vmul.f32 %v1544, 1.702
        %v1550 = vxor.u32 %v1549, 2147483648
        %v1551 = vmul.f32 %v1550, 1.442695
        %v1552 = vpow.pop %v1551
        %v1553 = vadd.f32 %v1552, 1.0
        %v1554 = vrcp.pop %v1553
        %v1555 = vmul.f32 1.0, %v1554
        %v1556 = vmul.f32 %v1544, %v1555
        %v1557 = vpack.c.bf16 %v1556, %v1556
        %v1558 = vld [vmem:[%s15] sm:$0xf]
        %v1559 = vld [vmem:[%s15 + $0x4] sm:$0xf]
        %v1560 = vld [vmem:[%s15 + $0x8] sm:$0xf]
        %v1561 = vld [vmem:[%s15 + $0xc] sm:$0xf]
        %v1562 = vld [vmem:[%s15 + $0x10] sm:$0xf]
        %v1563 = vld [vmem:[%s15 + $0x14] sm:$0xf]
        %v1564 = vld [vmem:[%s15 + $0x18] sm:$0xf]
        %v1565 = vld [vmem:[%s15 + $0x1c] sm:$0xf]
        %v1566 = vld [vmem:[%s15 + $0x20] sm:$0xf]
        %v1567 = vld [vmem:[%s15 + $0x24] sm:$0xf]
        %v1568 = vld [vmem:[%s15 + $0x28] sm:$0xf]
        %v1569 = vld [vmem:[%s15 + $0x2c] sm:$0xf]
        %v1570 = vld [vmem:[%s15 + $0x30] sm:$0xf]
        %v1571 = vld [vmem:[%s15 + $0x34] sm:$0xf]
        %v1572 = vld [vmem:[%s15 + $0x38] sm:$0xf]
        %v1573 = vld [vmem:[%s15 + $0x3c] sm:$0xf]
        %v1590 = vunpack.c.l.b16 %v1558
        %v1591 = vunpack.c.l.b16 %v1559
        %v1592 = vunpack.c.l.b16 %v1560
        %v1593 = vunpack.c.l.b16 %v1561
        %v1594 = vunpack.c.l.b16 %v1562
        %v1595 = vunpack.c.l.b16 %v1563
        %v1596 = vunpack.c.l.b16 %v1564
        %v1597 = vunpack.c.l.b16 %v1565
        %v1598 = vunpack.c.l.b16 %v1566
        %v1599 = vunpack.c.l.b16 %v1567
        %v1600 = vunpack.c.l.b16 %v1568
        %v1601 = vunpack.c.l.b16 %v1569
        %v1602 = vunpack.c.l.b16 %v1570
        %v1603 = vunpack.c.l.b16 %v1571
        %v1604 = vunpack.c.l.b16 %v1572
        %v1605 = vunpack.c.l.b16 %v1573
        %v1606 = vpack.c.b16 %v1591, %v1590
        %v1607 = vpack.c.b16 %v1593, %v1592
        %v1608 = vpack.c.b16 %v1595, %v1594
        %v1609 = vpack.c.b16 %v1597, %v1596
        %v1610 = vpack.c.b16 %v1599, %v1598
        %v1611 = vpack.c.b16 %v1601, %v1600
        %v1612 = vpack.c.b16 %v1603, %v1602
        %v1613 = vpack.c.b16 %v1605, %v1604
        %1622 = vmatprep.subr.bf16.mxu0 0
        %1623 = vmatpush1.bf16.msra.mxu0 %v1606
        %1624 = vmatprep.subr.bf16.mxu0 0
        %1625 = vmatpush1.bf16.msra.mxu0 %v1607
        %1626 = vmatprep.subr.bf16.mxu0 0
        %1627 = vmatpush1.bf16.msra.mxu0 %v1608
        %1628 = vmatprep.subr.bf16.mxu0 0
        %1629 = vmatpush1.bf16.msra.mxu0 %v1609
        %1630 = vmatprep.subr.bf16.mxu0 0
        %1631 = vmatpush1.bf16.msra.mxu0 %v1610
        %1632 = vmatprep.subr.bf16.mxu0 0
        %1633 = vmatpush1.bf16.msra.mxu0 %v1611
        %1634 = vmatprep.subr.bf16.mxu0 0
        %1635 = vmatpush1.bf16.msra.mxu0 %v1612
        %1636 = vmatprep.subr.bf16.mxu0 0
        %1637 = vmatpush1.bf16.msra.mxu0 %v1613
        %1638 = vmatprep.subr.bf16.mxu0 0
        %1639 = vmatpush1.bf16.msra.mxu0 0
        %1640 = vmatprep.subr.bf16.mxu0 0
        %1641 = vmatpush1.bf16.msra.mxu0 0
        %1642 = vmatprep.subr.bf16.mxu0 0
        %1643 = vmatpush1.bf16.msra.mxu0 0
        %1644 = vmatprep.subr.bf16.mxu0 0
        %1645 = vmatpush1.bf16.msra.mxu0 0
        %1646 = vmatprep.subr.bf16.mxu0 0
        %1647 = vmatpush1.bf16.msra.mxu0 0
        %1648 = vmatprep.subr.bf16.mxu0 0
        %1649 = vmatpush1.bf16.msra.mxu0 0
        %1650 = vmatprep.subr.bf16.mxu0 0
        %1651 = vmatpush1.bf16.msra.mxu0 0
        %1652 = vmatprep.subr.bf16.mxu0 0
        %1653 = vmatpush1.bf16.msra.mxu0 0
        %1654 = vmatprep.mubr.bf16.mxu0 0
        %1655 = vmatmul.mubr.bf16.gmra.mrb[0].mxu0 %v1557
        %v1656 = vpop.f32.mrb[0].mxu0
        %v1657 = vadd.f32 0.0, %v1656
        %v1658 = vpop.f32.mrb[0].mxu0
        %v1659 = vpop.f32.mrb[0].mxu0
        %v1660 = vpop.f32.mrb[0].mxu0
        %1661 = vdwg.mxu0
        %v1662 = vadd.f32 %v1452, %v1657
        %v1663 = vld [vmem:[%s16] sm:$0x1]
        %v1665 = vlaneseq
        %v1666 = vshrl.u32 %v1665, 7
        %v1667 = vsub.s32 0, %v1666
        %v1668 = vrot.slane %v1663, %v1667
        %v1670 = vadd.f32 %v1662, %v1668
        %1671 = vst.msk [vmem:[%s577] sm:$0xff] %vm586, %v1670
        %s1672 = sand.u32 %s403, 1
        %s1673 = scalar_lea.sflag [#allocation4], %s1672
        %s1674 = sand.u32 %s403, 1
        %s1675 = smul.addr %s1674, 8
        %s1676 = scalar_lea.vmem [#allocation8], %s1675
        // Predicated region
        $region101: #{tpu_custom_call.1} parent=87 // pred_check
          %p1677 = pneg %p413
        $region102: #{tpu_custom_call.1} parent=87 // pred_check_branch
          %1679 = sbr.rel (%p1677) target = $region104
        $region103: #{tpu_custom_call.1} parent=87 // pred_region
          %s1681 = ssub.s32 128, 128
          %1682 = vsyncadd %s1673, %s1681
          %s1683 = smul.addr %s33, 128
          %s1684 = scalar_lea.hbm %s17, %s1683
          %s1686 = sshll.u32 %s1676, 4
          %s1687 = int_to_ptr.vmem [resolvable:$true] %s1686
          %1689 = dma.vmem_to_hbm [thread:$0]  %s1687, 128, %s1684, %s1673
        $region104: #{tpu_custom_call.1} parent=87 // pred_fallthru
          _
      $region88: #{tpu_custom_call.1} parent=5 // pred_fallthru
        _
      %p1690 = scmp.le.s32.totalorder 2, %s28
      // Predicated region
      $region105: #{tpu_custom_call.1} parent=5 // pred_check
        %p1691 = pneg %p1690
      $region106: #{tpu_custom_call.1} parent=5 // pred_check_branch
        %1693 = sbr.rel (%p1691) target = $region108
      $region107: #{tpu_custom_call.1} parent=5 // pred_region
        %s1694 = ssub.s32 %s28, 2
        // Predicated region
        $region109: #{tpu_custom_call.1} parent=107 // pred_check
          %p1695 = pneg %p419
        $region110: #{tpu_custom_call.1} parent=107 // pred_check_branch
          %1697 = sbr.rel (%p1695) target = $region112
        $region111: #{tpu_custom_call.1} parent=107 // pred_region
          %s1698 = sand.u32 %s404, 1
          %s1699 = scalar_lea.sflag [#allocation4], %s1698
          %s1700 = sand.u32 %s404, 1
          %s1701 = smul.addr %s1700, 8
          %s1702 = scalar_lea.vmem [#allocation8], %s1701
          %1703 = dma.done %s1699, 128
        $region112: #{tpu_custom_call.1} parent=107 // pred_fallthru
          _
      $region108: #{tpu_custom_call.1} parent=5 // pred_fallthru
        _
    $region6: #{tpu_custom_call.1} parent=1 // loop_footer
      %s32 = sadd.s32 1, %s28
    $region7: #{tpu_custom_call.1} parent=1 // loop_footer_branch
      %27 = sbr.rel target = $region3
    $region8: #{tpu_custom_call.1} parent=1 // loop_exit
      _
    %1704 = vsyncpa [#allocation3], 1
    %s1705 = scalar_lea.sflag [#allocation3], 1
    %1706 = vsyncpa %s1705, 1
    %1707 = vsyncpa [#allocation6], 1
    %1708 = vsyncpa [#allocation4], 1
    %s1709 = scalar_lea.sflag [#allocation4], 1
    %1710 = vsyncpa %s1709, 1

</llo_original>
